<compile_context>
chip_gen: v5e
topology: v5e:2x2
jax: 0.10.0
libtpu: 0.0.40
codegen_flags: <defaults>
</compile_context>

<pallas_src>
import functools

import jax
import jax.numpy as jnp
from jax.experimental import pallas as pl
from jax.experimental.pallas import tpu as pltpu


# ----------------------------- Pallas kernel -------------------------------

def _residual_block_kernel(x_ref, w1_ref, w2_ref, out_ref, *, H, W, C, eps):
    """Fused ResidualBlock for one image.

    x_ref:   (H, W, C)     f32  input image (NHWC tile, batch dim squeezed)
    w*_ref:  (3, 3*C, C)   bf16 conv weights, row-major taps: (kh, [kw, cin], cout)
    out_ref: (H, W, C)     f32  x + conv_block(x)
    """
    x = x_ref[...]                      # (H, W, C) f32 (kept for the residual add)
    inv_hw = 1.0 / float(H * W)

    def conv3x3_instnorm(xin, w_ref_):
        # xin: (H, W, C) bf16 — cast ONCE at the call site, before building taps.
        # In-register reflection pad (pad=1) on W then H (pure slicing, bf16
        # halves the copy bytes vs the previous f32 pads).
        xp = jnp.concatenate(
            [xin[:, 1:2, :], xin, xin[:, W - 2:W - 1, :]], axis=1)
        xp = jnp.concatenate(
            [xp[1:2, :, :], xp, xp[H - 2:H - 1, :, :]], axis=0)   # (H+2, W+2, C)

        # Row-grouped accumulating matmuls: 3 MXU pushes of (H*W, 3C) @ (3C, C)
        # into one f32 accumulator, instead of materializing a (H*W, 9C)
        # im2col buffer.  K = 3C better fills the 256-deep v6e/v7x MXU; on
        # v5e (128-deep) it simply becomes multi-pass, still correct.
        acc = None
        for kh in range(3):
            row = jnp.concatenate(
                [xp[kh:kh + H, kw:kw + W, :] for kw in range(3)],
                axis=-1).reshape(H * W, 3 * C)                     # (HW, 3C) bf16
            part = jnp.dot(row, w_ref_[kh],
                           preferred_element_type=jnp.float32)    # (HW, C) f32
            acc = part if acc is None else acc + part

        # InstanceNorm2d (affine=False, biased variance, eps=1e-5).
        # Two-pass centered variance: numerically robust when |mean| >> std
        # (post-ReLU inputs), same number of elementwise passes as E[x^2]-m^2.
        # (The conv bias is mathematically cancelled by this mean subtraction.)
        mean = jnp.sum(acc, axis=0, keepdims=True) * inv_hw       # (1, C)
        centered = acc - mean
        var = jnp.sum(centered * centered, axis=0, keepdims=True) * inv_hw
        return centered * jax.lax.rsqrt(var + eps)                # (HW, C) f32

    # conv1 + IN + ReLU
    h = jnp.maximum(conv3x3_instnorm(x.astype(jnp.bfloat16), w1_ref), 0.0)
    h = h.reshape(H, W, C).astype(jnp.bfloat16)                   # cast once for conv2
    # conv2 + IN
    y = conv3x3_instnorm(h, w2_ref).reshape(H, W, C)
    out_ref[...] = x + y                                          # residual add


# ------------------------------ wrapper -------------------------------------

def _vmem_limit_bytes():
    """Generation-aware scoped-VMEM limit (leave headroom under physical VMEM)."""
    try:
        cap = pltpu.get_tpu_info().vmem_capacity_bytes
    except Exception:   # pragma: no cover - conservative fallback
        cap = 64 * 1024 * 1024
    # ~112 MiB on 128 MiB parts (v5e/v6e), ~52 MiB on v7x (64 MiB physical).
    return max(min(cap - 12 * 1024 * 1024, 112 * 1024 * 1024), 16 * 1024 * 1024)


def residual_block_pallas(x_nchw, w1, b1, w2, b2, eps=1e-5):
    """x_nchw: (N, C, H, W); w*: (Cout, Cin, 3, 3) [PyTorch OIHW]; b*: (Cout,).

    Conv biases are accepted for interface parity but unused: a per-channel
    bias is cancelled exactly by the InstanceNorm2d(affine=False) that
    immediately follows each conv.  Keep that invariant if the module changes.
    """
    del b1, b2
    N, C, H, W = x_nchw.shape
    # Kernel assumptions (ResidualBlock uses Conv2d(in_features, in_features, 3)).
    assert w1.shape == (C, C, 3, 3) and w2.shape == (C, C, 3, 3), \
        "ResidualBlock kernel requires Cin == Cout == C and 3x3 kernels"
    assert H >= 2 and W >= 2, "ReflectionPad2d(1) requires H, W >= 2"

    x = jnp.transpose(x_nchw, (0, 2, 3, 1))                        # -> NHWC

    def prep_weight(w):
        # OIHW -> (kh, kw, cin, cout) -> (3, 3*Cin, Cout), bf16 for the MXU.
        return jnp.transpose(w, (2, 3, 1, 0)).reshape(3, 3 * C, C).astype(jnp.bfloat16)

    w1k, w2k = prep_weight(w1), prep_weight(w2)

    # Advisory cost: two 3x3 convs (MAC = 2 flops), in/out f32 + bf16 weights.
    flops = 2 * 2 * N * H * W * (9 * C) * C
    bytes_accessed = 2 * N * H * W * C * 4 + 2 * (3 * 3 * C * C) * 2
    cost = pl.CostEstimate(flops=flops,
                           transcendentals=2 * N * C,              # rsqrt per IN
                           bytes_accessed=bytes_accessed)

    kernel = functools.partial(_residual_block_kernel, H=H, W=W, C=C, eps=eps)
    y = pl.pallas_call(
        kernel,
        out_shape=jax.ShapeDtypeStruct((N, H, W, C), jnp.float32),
        grid_spec=pltpu.PrefetchScalarGridSpec(
            num_scalar_prefetch=0,
            grid=(N,),
            in_specs=[
                pl.BlockSpec((None, H, W, C), lambda n: (n, 0, 0, 0)),   # image
                pl.BlockSpec((3, 3 * C, C), lambda n: (0, 0, 0)),        # w1
                pl.BlockSpec((3, 3 * C, C), lambda n: (0, 0, 0)),        # w2
            ],
            out_specs=pl.BlockSpec((None, H, W, C), lambda n: (n, 0, 0, 0)),
        ),
        compiler_params=pltpu.CompilerParams(
            dimension_semantics=("parallel",),
            vmem_limit_bytes=_vmem_limit_bytes()),
        cost_estimate=cost,
    )(x, w1k, w2k)
    return jnp.transpose(y, (0, 3, 1, 2))                           # -> NCHW


# --------------------------- pure-JAX reference -----------------------------

def _ref_residual_block(x, w1, b1, w2, b2, eps=1e-5):
    def conv(x, w, b):
        xp = jnp.pad(x, ((0, 0), (0, 0), (1, 1), (1, 1)), mode='reflect')
        y = jax.lax.conv_general_dilated(
            xp, w, (1, 1), 'VALID',
            dimension_numbers=('NCHW', 'OIHW', 'NCHW'),
            precision=jax.lax.Precision.HIGHEST)
        return y + b[None, :, None, None]

    def inorm(y):
        mean = y.mean(axis=(2, 3), keepdims=True)
        var = ((y - mean) ** 2).mean(axis=(2, 3), keepdims=True)
        return (y - mean) * jax.lax.rsqrt(var + eps)

    h = jax.nn.relu(inorm(conv(x, w1, b1)))
    return x + inorm(conv(h, w2, b2))


# ----------------------------------- main -----------------------------------

if __name__ == "__main__":
    # NOTE: C=4 only uses 4/128 lanes — perf numbers at this toy shape are
    # meaningless; benchmark at C=128 where the NHWC layout is lane-dense.
    N, C, H, W = 2, 4, 16, 16
    keys = jax.random.split(jax.random.PRNGKey(0), 5)
    x = jax.random.normal(keys[0], (N, C, H, W), jnp.float32)
    # Deterministic synthetic parameters (same shapes as nn.Conv2d(C, C, 3)).
    w1 = jax.random.normal(keys[1], (C, C, 3, 3), jnp.float32) * 0.2
    b1 = jax.random.normal(keys[2], (C,), jnp.float32) * 0.1
    w2 = jax.random.normal(keys[3], (C, C, 3, 3), jnp.float32) * 0.2
    b2 = jax.random.normal(keys[4], (C,), jnp.float32) * 0.1

    out = jax.jit(residual_block_pallas)(x, w1, b1, w2, b2)
    out = jax.block_until_ready(out)

    ref = _ref_residual_block(x, w1, b1, w2, b2)
    assert out.shape == (N, C, H, W)
    # Tolerance accounts for the bf16-operand / f32-accumulate MXU path vs the
    # full-f32 HIGHEST reference (observed errors ~1e-2; structural bugs such
    # as wrong taps/padding produce errors > 3e-1).
    err = float(jnp.max(jnp.abs(out - ref)))
    assert jnp.allclose(out, ref, rtol=5e-2, atol=5e-2), err
    print("KERNEL_OK")
</pallas_src>

<mosaic_0001>
module attributes {stable_mosaic.version = 11 : i64} {
  func.func @_residual_block_kernel(%arg0: i32, %arg1: memref<1x16x16x4xf32, #tpu.memory_space<vmem>>, %arg2: memref<3x12x4xbf16, #tpu.memory_space<vmem>>, %arg3: memref<3x12x4xbf16, #tpu.memory_space<vmem>>, %arg4: memref<1x16x16x4xf32, #tpu.memory_space<vmem>>) attributes {dimension_semantics = [#tpu.dimension_semantics<parallel>], iteration_bounds = array<i64: 2>, scalar_prefetch = 0 : i64, scratch_operands = 0 : i64, tpu.core_type = #tpu.core_type<tc>, window_params = [{transform_indices = @transform_0, window_bounds = array<i64: 1, 16, 16, 4>}, {pipeline_mode = #tpu.pipeline_mode<synchronous>, transform_indices = @transform_1, window_bounds = array<i64: 3, 12, 4>}, {pipeline_mode = #tpu.pipeline_mode<synchronous>, transform_indices = @transform_2, window_bounds = array<i64: 3, 12, 4>}, {transform_indices = @transform_3, window_bounds = array<i64: 1, 16, 16, 4>}]} {
    %c0 = arith.constant 0 : index
    %c0_0 = arith.constant 0 : index
    %c0_1 = arith.constant 0 : index
    %c0_2 = arith.constant 0 : index
    %0 = vector.load %arg1[%c0, %c0_0, %c0_1, %c0_2] : memref<1x16x16x4xf32, #tpu.memory_space<vmem>>, vector<1x16x16x4xf32>
    %1 = vector.shape_cast %0 : vector<1x16x16x4xf32> to vector<16x16x4xf32>
    %2 = arith.truncf %1 : vector<16x16x4xf32> to vector<16x16x4xbf16>
    %3 = vector.extract_strided_slice %2 {offsets = [0, 1, 0], sizes = [16, 1, 4], strides = [1, 1, 1]} : vector<16x16x4xbf16> to vector<16x1x4xbf16>
    %4 = vector.extract_strided_slice %2 {offsets = [0, 14, 0], sizes = [16, 1, 4], strides = [1, 1, 1]} : vector<16x16x4xbf16> to vector<16x1x4xbf16>
    %5 = tpu.concatenate %3, %2, %4 in 1 : vector<16x1x4xbf16>, vector<16x16x4xbf16>, vector<16x1x4xbf16> -> vector<16x18x4xbf16>
    %6 = vector.extract_strided_slice %5 {offsets = [1, 0, 0], sizes = [1, 18, 4], strides = [1, 1, 1]} : vector<16x18x4xbf16> to vector<1x18x4xbf16>
    %7 = vector.extract_strided_slice %5 {offsets = [14, 0, 0], sizes = [1, 18, 4], strides = [1, 1, 1]} : vector<16x18x4xbf16> to vector<1x18x4xbf16>
    %8 = tpu.concatenate %6, %5, %7 in 0 : vector<1x18x4xbf16>, vector<16x18x4xbf16>, vector<1x18x4xbf16> -> vector<18x18x4xbf16>
    %9 = vector.extract_strided_slice %8 {offsets = [0, 0, 0], sizes = [16, 16, 4], strides = [1, 1, 1]} : vector<18x18x4xbf16> to vector<16x16x4xbf16>
    %10 = vector.extract_strided_slice %8 {offsets = [0, 1, 0], sizes = [16, 16, 4], strides = [1, 1, 1]} : vector<18x18x4xbf16> to vector<16x16x4xbf16>
    %11 = vector.extract_strided_slice %8 {offsets = [0, 2, 0], sizes = [16, 16, 4], strides = [1, 1, 1]} : vector<18x18x4xbf16> to vector<16x16x4xbf16>
    %12 = tpu.concatenate %9, %10, %11 in 2 : vector<16x16x4xbf16>, vector<16x16x4xbf16>, vector<16x16x4xbf16> -> vector<16x16x12xbf16>
    %13 = vector.shape_cast %12 : vector<16x16x12xbf16> to vector<256x12xbf16>
    %c0_3 = arith.constant 0 : index
    %c0_4 = arith.constant 0 : index
    %c0_5 = arith.constant 0 : index
    %14 = vector.load %arg2[%c0_3, %c0_4, %c0_5] : memref<3x12x4xbf16, #tpu.memory_space<vmem>>, vector<1x12x4xbf16>
    %15 = vector.shape_cast %14 : vector<1x12x4xbf16> to vector<12x4xbf16>
    %cst = arith.constant dense<0.000000e+00> : vector<256x4xf32>
    %16 = tpu.matmul %13, %15, %cst {dimension_numbers = #tpu.dot_dimension_numbers<[1], [0], [0], [1], [0, 0, 1, 1], [], []>} : vector<256x12xbf16>, vector<12x4xbf16>, vector<256x4xf32> -> vector<256x4xf32>
    %17 = vector.extract_strided_slice %8 {offsets = [1, 0, 0], sizes = [16, 16, 4], strides = [1, 1, 1]} : vector<18x18x4xbf16> to vector<16x16x4xbf16>
    %18 = vector.extract_strided_slice %8 {offsets = [1, 1, 0], sizes = [16, 16, 4], strides = [1, 1, 1]} : vector<18x18x4xbf16> to vector<16x16x4xbf16>
    %19 = vector.extract_strided_slice %8 {offsets = [1, 2, 0], sizes = [16, 16, 4], strides = [1, 1, 1]} : vector<18x18x4xbf16> to vector<16x16x4xbf16>
    %20 = tpu.concatenate %17, %18, %19 in 2 : vector<16x16x4xbf16>, vector<16x16x4xbf16>, vector<16x16x4xbf16> -> vector<16x16x12xbf16>
    %21 = vector.shape_cast %20 : vector<16x16x12xbf16> to vector<256x12xbf16>
    %c1 = arith.constant 1 : index
    %c0_6 = arith.constant 0 : index
    %c0_7 = arith.constant 0 : index
    %22 = vector.load %arg2[%c1, %c0_6, %c0_7] : memref<3x12x4xbf16, #tpu.memory_space<vmem>>, vector<1x12x4xbf16>
    %23 = vector.shape_cast %22 : vector<1x12x4xbf16> to vector<12x4xbf16>
    %cst_8 = arith.constant dense<0.000000e+00> : vector<256x4xf32>
    %24 = tpu.matmul %21, %23, %cst_8 {dimension_numbers = #tpu.dot_dimension_numbers<[1], [0], [0], [1], [0, 0, 1, 1], [], []>} : vector<256x12xbf16>, vector<12x4xbf16>, vector<256x4xf32> -> vector<256x4xf32>
    %25 = arith.addf %16, %24 : vector<256x4xf32>
    %26 = vector.extract_strided_slice %8 {offsets = [2, 0, 0], sizes = [16, 16, 4], strides = [1, 1, 1]} : vector<18x18x4xbf16> to vector<16x16x4xbf16>
    %27 = vector.extract_strided_slice %8 {offsets = [2, 1, 0], sizes = [16, 16, 4], strides = [1, 1, 1]} : vector<18x18x4xbf16> to vector<16x16x4xbf16>
    %28 = vector.extract_strided_slice %8 {offsets = [2, 2, 0], sizes = [16, 16, 4], strides = [1, 1, 1]} : vector<18x18x4xbf16> to vector<16x16x4xbf16>
    %29 = tpu.concatenate %26, %27, %28 in 2 : vector<16x16x4xbf16>, vector<16x16x4xbf16>, vector<16x16x4xbf16> -> vector<16x16x12xbf16>
    %30 = vector.shape_cast %29 : vector<16x16x12xbf16> to vector<256x12xbf16>
    %c2 = arith.constant 2 : index
    %c0_9 = arith.constant 0 : index
    %c0_10 = arith.constant 0 : index
    %31 = vector.load %arg2[%c2, %c0_9, %c0_10] : memref<3x12x4xbf16, #tpu.memory_space<vmem>>, vector<1x12x4xbf16>
    %32 = vector.shape_cast %31 : vector<1x12x4xbf16> to vector<12x4xbf16>
    %cst_11 = arith.constant dense<0.000000e+00> : vector<256x4xf32>
    %33 = tpu.matmul %30, %32, %cst_11 {dimension_numbers = #tpu.dot_dimension_numbers<[1], [0], [0], [1], [0, 0, 1, 1], [], []>} : vector<256x12xbf16>, vector<12x4xbf16>, vector<256x4xf32> -> vector<256x4xf32>
    %34 = arith.addf %25, %33 : vector<256x4xf32>
    %cst_12 = arith.constant dense<0.000000e+00> : vector<4xf32>
    %35 = vector.multi_reduction <add>, %34, %cst_12 [0] : vector<256x4xf32> to vector<4xf32>
    %36 = vector.shape_cast %35 : vector<4xf32> to vector<1x4xf32>
    %cst_13 = arith.constant 3.906250e-03 : f32
    %37 = vector.broadcast %cst_13 : f32 to vector<1x4xf32>
    %38 = arith.mulf %36, %37 : vector<1x4xf32>
    %39 = vector.broadcast %38 : vector<1x4xf32> to vector<256x4xf32>
    %40 = arith.subf %34, %39 : vector<256x4xf32>
    %41 = arith.mulf %40, %40 : vector<256x4xf32>
    %cst_14 = arith.constant dense<0.000000e+00> : vector<4xf32>
    %42 = vector.multi_reduction <add>, %41, %cst_14 [0] : vector<256x4xf32> to vector<4xf32>
    %43 = vector.shape_cast %42 : vector<4xf32> to vector<1x4xf32>
    %cst_15 = arith.constant 3.906250e-03 : f32
    %44 = vector.broadcast %cst_15 : f32 to vector<1x4xf32>
    %45 = arith.mulf %43, %44 : vector<1x4xf32>
    %cst_16 = arith.constant 9.99999974E-6 : f32
    %46 = vector.broadcast %cst_16 : f32 to vector<1x4xf32>
    %47 = arith.addf %45, %46 : vector<1x4xf32>
    %48 = math.rsqrt %47 : vector<1x4xf32>
    %49 = vector.broadcast %48 : vector<1x4xf32> to vector<256x4xf32>
    %50 = arith.mulf %40, %49 : vector<256x4xf32>
    %cst_17 = arith.constant 0.000000e+00 : f32
    %51 = vector.broadcast %cst_17 : f32 to vector<256x4xf32>
    %52 = arith.maximumf %50, %51 : vector<256x4xf32>
    %53 = vector.shape_cast %52 : vector<256x4xf32> to vector<16x16x4xf32>
    %54 = arith.truncf %53 : vector<16x16x4xf32> to vector<16x16x4xbf16>
    %55 = vector.extract_strided_slice %54 {offsets = [0, 1, 0], sizes = [16, 1, 4], strides = [1, 1, 1]} : vector<16x16x4xbf16> to vector<16x1x4xbf16>
    %56 = vector.extract_strided_slice %54 {offsets = [0, 14, 0], sizes = [16, 1, 4], strides = [1, 1, 1]} : vector<16x16x4xbf16> to vector<16x1x4xbf16>
    %57 = tpu.concatenate %55, %54, %56 in 1 : vector<16x1x4xbf16>, vector<16x16x4xbf16>, vector<16x1x4xbf16> -> vector<16x18x4xbf16>
    %58 = vector.extract_strided_slice %57 {offsets = [1, 0, 0], sizes = [1, 18, 4], strides = [1, 1, 1]} : vector<16x18x4xbf16> to vector<1x18x4xbf16>
    %59 = vector.extract_strided_slice %57 {offsets = [14, 0, 0], sizes = [1, 18, 4], strides = [1, 1, 1]} : vector<16x18x4xbf16> to vector<1x18x4xbf16>
    %60 = tpu.concatenate %58, %57, %59 in 0 : vector<1x18x4xbf16>, vector<16x18x4xbf16>, vector<1x18x4xbf16> -> vector<18x18x4xbf16>
    %61 = vector.extract_strided_slice %60 {offsets = [0, 0, 0], sizes = [16, 16, 4], strides = [1, 1, 1]} : vector<18x18x4xbf16> to vector<16x16x4xbf16>
    %62 = vector.extract_strided_slice %60 {offsets = [0, 1, 0], sizes = [16, 16, 4], strides = [1, 1, 1]} : vector<18x18x4xbf16> to vector<16x16x4xbf16>
    %63 = vector.extract_strided_slice %60 {offsets = [0, 2, 0], sizes = [16, 16, 4], strides = [1, 1, 1]} : vector<18x18x4xbf16> to vector<16x16x4xbf16>
    %64 = tpu.concatenate %61, %62, %63 in 2 : vector<16x16x4xbf16>, vector<16x16x4xbf16>, vector<16x16x4xbf16> -> vector<16x16x12xbf16>
    %65 = vector.shape_cast %64 : vector<16x16x12xbf16> to vector<256x12xbf16>
    %c0_18 = arith.constant 0 : index
    %c0_19 = arith.constant 0 : index
    %c0_20 = arith.constant 0 : index
    %66 = vector.load %arg3[%c0_18, %c0_19, %c0_20] : memref<3x12x4xbf16, #tpu.memory_space<vmem>>, vector<1x12x4xbf16>
    %67 = vector.shape_cast %66 : vector<1x12x4xbf16> to vector<12x4xbf16>
    %cst_21 = arith.constant dense<0.000000e+00> : vector<256x4xf32>
    %68 = tpu.matmul %65, %67, %cst_21 {dimension_numbers = #tpu.dot_dimension_numbers<[1], [0], [0], [1], [0, 0, 1, 1], [], []>} : vector<256x12xbf16>, vector<12x4xbf16>, vector<256x4xf32> -> vector<256x4xf32>
    %69 = vector.extract_strided_slice %60 {offsets = [1, 0, 0], sizes = [16, 16, 4], strides = [1, 1, 1]} : vector<18x18x4xbf16> to vector<16x16x4xbf16>
    %70 = vector.extract_strided_slice %60 {offsets = [1, 1, 0], sizes = [16, 16, 4], strides = [1, 1, 1]} : vector<18x18x4xbf16> to vector<16x16x4xbf16>
    %71 = vector.extract_strided_slice %60 {offsets = [1, 2, 0], sizes = [16, 16, 4], strides = [1, 1, 1]} : vector<18x18x4xbf16> to vector<16x16x4xbf16>
    %72 = tpu.concatenate %69, %70, %71 in 2 : vector<16x16x4xbf16>, vector<16x16x4xbf16>, vector<16x16x4xbf16> -> vector<16x16x12xbf16>
    %73 = vector.shape_cast %72 : vector<16x16x12xbf16> to vector<256x12xbf16>
    %c1_22 = arith.constant 1 : index
    %c0_23 = arith.constant 0 : index
    %c0_24 = arith.constant 0 : index
    %74 = vector.load %arg3[%c1_22, %c0_23, %c0_24] : memref<3x12x4xbf16, #tpu.memory_space<vmem>>, vector<1x12x4xbf16>
    %75 = vector.shape_cast %74 : vector<1x12x4xbf16> to vector<12x4xbf16>
    %cst_25 = arith.constant dense<0.000000e+00> : vector<256x4xf32>
    %76 = tpu.matmul %73, %75, %cst_25 {dimension_numbers = #tpu.dot_dimension_numbers<[1], [0], [0], [1], [0, 0, 1, 1], [], []>} : vector<256x12xbf16>, vector<12x4xbf16>, vector<256x4xf32> -> vector<256x4xf32>
    %77 = arith.addf %68, %76 : vector<256x4xf32>
    %78 = vector.extract_strided_slice %60 {offsets = [2, 0, 0], sizes = [16, 16, 4], strides = [1, 1, 1]} : vector<18x18x4xbf16> to vector<16x16x4xbf16>
    %79 = vector.extract_strided_slice %60 {offsets = [2, 1, 0], sizes = [16, 16, 4], strides = [1, 1, 1]} : vector<18x18x4xbf16> to vector<16x16x4xbf16>
    %80 = vector.extract_strided_slice %60 {offsets = [2, 2, 0], sizes = [16, 16, 4], strides = [1, 1, 1]} : vector<18x18x4xbf16> to vector<16x16x4xbf16>
    %81 = tpu.concatenate %78, %79, %80 in 2 : vector<16x16x4xbf16>, vector<16x16x4xbf16>, vector<16x16x4xbf16> -> vector<16x16x12xbf16>
    %82 = vector.shape_cast %81 : vector<16x16x12xbf16> to vector<256x12xbf16>
    %c2_26 = arith.constant 2 : index
    %c0_27 = arith.constant 0 : index
    %c0_28 = arith.constant 0 : index
    %83 = vector.load %arg3[%c2_26, %c0_27, %c0_28] : memref<3x12x4xbf16, #tpu.memory_space<vmem>>, vector<1x12x4xbf16>
    %84 = vector.shape_cast %83 : vector<1x12x4xbf16> to vector<12x4xbf16>
    %cst_29 = arith.constant dense<0.000000e+00> : vector<256x4xf32>
    %85 = tpu.matmul %82, %84, %cst_29 {dimension_numbers = #tpu.dot_dimension_numbers<[1], [0], [0], [1], [0, 0, 1, 1], [], []>} : vector<256x12xbf16>, vector<12x4xbf16>, vector<256x4xf32> -> vector<256x4xf32>
    %86 = arith.addf %77, %85 : vector<256x4xf32>
    %cst_30 = arith.constant dense<0.000000e+00> : vector<4xf32>
    %87 = vector.multi_reduction <add>, %86, %cst_30 [0] : vector<256x4xf32> to vector<4xf32>
    %88 = vector.shape_cast %87 : vector<4xf32> to vector<1x4xf32>
    %cst_31 = arith.constant 3.906250e-03 : f32
    %89 = vector.broadcast %cst_31 : f32 to vector<1x4xf32>
    %90 = arith.mulf %88, %89 : vector<1x4xf32>
    %91 = vector.broadcast %90 : vector<1x4xf32> to vector<256x4xf32>
    %92 = arith.subf %86, %91 : vector<256x4xf32>
    %93 = arith.mulf %92, %92 : vector<256x4xf32>
    %cst_32 = arith.constant dense<0.000000e+00> : vector<4xf32>
    %94 = vector.multi_reduction <add>, %93, %cst_32 [0] : vector<256x4xf32> to vector<4xf32>
    %95 = vector.shape_cast %94 : vector<4xf32> to vector<1x4xf32>
    %cst_33 = arith.constant 3.906250e-03 : f32
    %96 = vector.broadcast %cst_33 : f32 to vector<1x4xf32>
    %97 = arith.mulf %95, %96 : vector<1x4xf32>
    %cst_34 = arith.constant 9.99999974E-6 : f32
    %98 = vector.broadcast %cst_34 : f32 to vector<1x4xf32>
    %99 = arith.addf %97, %98 : vector<1x4xf32>
    %100 = math.rsqrt %99 : vector<1x4xf32>
    %101 = vector.broadcast %100 : vector<1x4xf32> to vector<256x4xf32>
    %102 = arith.mulf %92, %101 : vector<256x4xf32>
    %103 = vector.shape_cast %102 : vector<256x4xf32> to vector<16x16x4xf32>
    %104 = arith.addf %1, %103 : vector<16x16x4xf32>
    %c0_35 = arith.constant 0 : index
    %c0_36 = arith.constant 0 : index
    %c0_37 = arith.constant 0 : index
    %c0_38 = arith.constant 0 : index
    %105 = vector.load %arg4[%c0_35, %c0_36, %c0_37, %c0_38] : memref<1x16x16x4xf32, #tpu.memory_space<vmem>>, vector<1x16x16x4xf32>
    %106 = vector.shape_cast %105 : vector<1x16x16x4xf32> to vector<16x16x4xf32>
    %107 = vector.shape_cast %104 : vector<16x16x4xf32> to vector<1x16x16x4xf32>
    tpu.vector_store %arg4[%c0_35, %c0_36, %c0_37, %c0_38], %107 {strides = array<i32>} : memref<1x16x16x4xf32, #tpu.memory_space<vmem>>, vector<1x16x16x4xf32>,
    return
  }
  func.func @transform_0(%arg0: i32) -> (i32, i32, i32, i32) {
    %c0_i32 = arith.constant 0 : i32
    %c0_i32_0 = arith.constant 0 : i32
    %c0_i32_1 = arith.constant 0 : i32
    %c0_i32_2 = arith.constant 0 : i32
    return %arg0, %c0_i32, %c0_i32_0, %c0_i32_1 : i32, i32, i32, i32
  }
  func.func @transform_1(%arg0: i32) -> (i32, i32, i32) {
    %c0_i32 = arith.constant 0 : i32
    %c0_i32_0 = arith.constant 0 : i32
    %c0_i32_1 = arith.constant 0 : i32
    %c0_i32_2 = arith.constant 0 : i32
    return %c0_i32, %c0_i32_0, %c0_i32_1 : i32, i32, i32
  }
  func.func @transform_2(%arg0: i32) -> (i32, i32, i32) {
    %c0_i32 = arith.constant 0 : i32
    %c0_i32_0 = arith.constant 0 : i32
    %c0_i32_1 = arith.constant 0 : i32
    %c0_i32_2 = arith.constant 0 : i32
    return %c0_i32, %c0_i32_0, %c0_i32_1 : i32, i32, i32
  }
  func.func @transform_3(%arg0: i32) -> (i32, i32, i32, i32) {
    %c0_i32 = arith.constant 0 : i32
    %c0_i32_0 = arith.constant 0 : i32
    %c0_i32_1 = arith.constant 0 : i32
    %c0_i32_2 = arith.constant 0 : i32
    return %arg0, %c0_i32, %c0_i32_0, %c0_i32_1 : i32, i32, i32, i32
  }
}

</mosaic_0001>

<llo_original>
// kernel: residual_block_pallas.1
$region0: #{residual_block_pallas.1}
  #allocation0 [shape = 'u32[]', space=smem, size = 0x4, offset = 0x4, fixed_abs, tag = 'smem constant byte address 0x4 - core index']
  #allocation1 [shape = 'u32[72,128]{1,0:T(1,128)}', space=vmem, size = 0x9000, scoped, tag = 'internal scratch']
  %s0 = inlined_call_operand.vmem [shape: f32[2,16,16,4], index: 0, kind: input, shape index: {}]
  %s1 = inlined_call_operand.vmem [shape: bf16[3,12,4], index: 1, kind: input, shape index: {}]
  %s2 = inlined_call_operand.vmem [shape: bf16[3,12,4], index: 2, kind: input, shape index: {}]
  %s3 = inlined_call_operand.vmem [shape: f32[2,16,16,4], index: 3, kind: output, shape index: {}]
  %s4 = sld [smem:[#allocation0]]
  $region45: #{residual_block_pallas.1} parent=0
    _
  %s6 = ssub.s32 1, %s4
  %s7 = scalar_select 0, %s6, %s4
  loop: start=0, step=1, limit=4
  $region2: #{residual_block_pallas.1} parent=0 // loop_pre_header
    _
  $region3: #{residual_block_pallas.1} parent=0 // loop_header
    %s9 = sphi 0, %s13
    %p10 = scmp.ge.s32.totalorder %s9, 4
    %s19 = sphi 0, %s21
    %s22 = sphi 0, %s19
    %s23 = sphi 0, %s22
    %s39 = sphi 0, %s23
    %s43 = sphi 0, %s43
    %s45 = sphi 0, %s43
    %s46 = sphi 0, %s45
    %s60 = sphi 0, %s46
    %s64 = sphi 0, %s64
    %s66 = sphi 0, %s64
    %s67 = sphi 0, %s66
    %s81 = sphi 0, %s67
    %s87 = sphi 0, %s89
    %s90 = sphi 0, %s87
    %s91 = sphi 0, %s90
    %s107 = sphi 0, %s91
  $region4: #{residual_block_pallas.1} parent=0 // loop_header_branch
    %12 = sbr.rel (%p10) target = $region8
  $region5: #{residual_block_pallas.1} parent=0 // loop_body
    %s14 = ssub.s32 %s9, 1
    %s15 = ssub.s32 %s9, 2
    %s16 = sadd.s32 %s9, 1
    %s17 = ssub.s32 %s9, %s16
    %p18 = scmp.eq.s32.totalorder %s17, 0
    %s20 = sadd.s32 %s19, 1
    %s21 = scalar_select %p18, %s19, %s20
    %p24 = pneg %p18
    %p25 = scmp.eq.s32.totalorder %s9, 1
    %p26 = por %p24, %p25
    %p27 = scmp.ne.s32.totalorder %s19, %s22
    %p28 = scmp.eq.s32.totalorder %s9, 0
    %p29 = por %p27, %p28
    %p30 = scmp.ne.s32.totalorder %s19, %s22
    %p31 = scmp.eq.s32.totalorder %s14, 1
    %p32 = por %p30, %p31
    %p33 = scmp.ne.s32.totalorder %s22, %s23
    %p34 = scmp.eq.s32.totalorder %s14, 0
    %p35 = por %p33, %p34
    %p36 = scmp.ne.s32.totalorder %s22, %s23
    %p37 = scmp.eq.s32.totalorder %s15, 1
    %p38 = por %p36, %p37
    %p40 = scmp.ne.s32.totalorder %s23, %s39
    %p41 = scmp.eq.s32.totalorder %s15, 0
    %p42 = por %p40, %p41
    %s44 = sadd.s32 %s43, 1
    %p47 = scmp.eq.s32.totalorder %s9, 1
    %p48 = scmp.ne.s32.totalorder %s43, %s45
    %p49 = scmp.eq.s32.totalorder %s9, 0
    %p50 = por %p48, %p49
    %p51 = scmp.ne.s32.totalorder %s43, %s45
    %p52 = scmp.eq.s32.totalorder %s14, 1
    %p53 = por %p51, %p52
    %p54 = scmp.ne.s32.totalorder %s45, %s46
    %p55 = scmp.eq.s32.totalorder %s14, 0
    %p56 = por %p54, %p55
    %p57 = scmp.ne.s32.totalorder %s45, %s46
    %p58 = scmp.eq.s32.totalorder %s15, 1
    %p59 = por %p57, %p58
    %p61 = scmp.ne.s32.totalorder %s46, %s60
    %p62 = scmp.eq.s32.totalorder %s15, 0
    %p63 = por %p61, %p62
    %s65 = sadd.s32 %s64, 1
    %p68 = scmp.eq.s32.totalorder %s9, 1
    %p69 = scmp.ne.s32.totalorder %s64, %s66
    %p70 = scmp.eq.s32.totalorder %s9, 0
    %p71 = por %p69, %p70
    %p72 = scmp.ne.s32.totalorder %s64, %s66
    %p73 = scmp.eq.s32.totalorder %s14, 1
    %p74 = por %p72, %p73
    %p75 = scmp.ne.s32.totalorder %s66, %s67
    %p76 = scmp.eq.s32.totalorder %s14, 0
    %p77 = por %p75, %p76
    %p78 = scmp.ne.s32.totalorder %s66, %s67
    %p79 = scmp.eq.s32.totalorder %s15, 1
    %p80 = por %p78, %p79
    %p82 = scmp.ne.s32.totalorder %s67, %s81
    %p83 = scmp.eq.s32.totalorder %s15, 0
    %p84 = por %p82, %p83
    %s85 = ssub.s32 %s9, %s16
    %p86 = scmp.eq.s32.totalorder %s85, 0
    %s88 = sadd.s32 %s87, 1
    %s89 = scalar_select %p86, %s87, %s88
    %p92 = pneg %p86
    %p93 = scmp.eq.s32.totalorder %s9, 1
    %p94 = por %p92, %p93
    %p95 = scmp.ne.s32.totalorder %s87, %s90
    %p96 = scmp.eq.s32.totalorder %s9, 0
    %p97 = por %p95, %p96
    %p98 = scmp.ne.s32.totalorder %s87, %s90
    %p99 = scmp.eq.s32.totalorder %s14, 1
    %p100 = por %p98, %p99
    %p101 = scmp.ne.s32.totalorder %s90, %s91
    %p102 = scmp.eq.s32.totalorder %s14, 0
    %p103 = por %p101, %p102
    %p104 = scmp.ne.s32.totalorder %s90, %s91
    %p105 = scmp.eq.s32.totalorder %s15, 1
    %p106 = por %p104, %p105
    %p108 = scmp.ne.s32.totalorder %s91, %s107
    %p109 = scmp.eq.s32.totalorder %s15, 0
    %p110 = por %p108, %p109
    %p111 = scmp.le.s32.totalorder 1, %s9
    %p112 = scmp.lt.s32.totalorder %s9, 3
    %p113 = pnand %p111, %p112
    %p114 = pneg %p113
    // Predicated region
    $region9: #{residual_block_pallas.1} parent=5 // pred_check
      _
    $region10: #{residual_block_pallas.1} parent=5 // pred_check_branch
      %116 = sbr.rel (%p113) target = $region12
    $region11: #{residual_block_pallas.1} parent=5 // pred_region
      %s117 = ssub.s32 %s9, 1
      // Predicated region
      $region13: #{residual_block_pallas.1} parent=11 // pred_check
        %p118 = pneg %p56
      $region14: #{residual_block_pallas.1} parent=11 // pred_check_branch
        %120 = sbr.rel (%p118) target = $region16
      $region15: #{residual_block_pallas.1} parent=11 // pred_region
        _
      $region16: #{residual_block_pallas.1} parent=11 // pred_fallthru
        _
      // Predicated region
      $region17: #{residual_block_pallas.1} parent=11 // pred_check
        %p121 = pneg %p77
      $region18: #{residual_block_pallas.1} parent=11 // pred_check_branch
        %123 = sbr.rel (%p121) target = $region20
      $region19: #{residual_block_pallas.1} parent=11 // pred_region
        _
      $region20: #{residual_block_pallas.1} parent=11 // pred_fallthru
        _
    $region12: #{residual_block_pallas.1} parent=5 // pred_fallthru
      _
    %p124 = scmp.lt.s32.totalorder %s9, 2
    // Predicated region
    $region21: #{residual_block_pallas.1} parent=5 // pred_check
      %p125 = pneg %p124
    $region22: #{residual_block_pallas.1} parent=5 // pred_check_branch
      %127 = sbr.rel (%p125) target = $region24
    $region23: #{residual_block_pallas.1} parent=5 // pred_region
      // Predicated region
      $region25: #{residual_block_pallas.1} parent=23 // pred_check
        %p128 = pneg %p29
      $region26: #{residual_block_pallas.1} parent=23 // pred_check_branch
        %130 = sbr.rel (%p128) target = $region28
      $region27: #{residual_block_pallas.1} parent=23 // pred_region
        %p131 = scmp.lt.s32.totalorder %s9, 1
        %s132 = scalar_select %p131, %s9, 1
        %s133 = smul.addr %s132, 32
        %s134 = smul.addr %s133, 8
        %s135 = scalar_lea.vmem %s0, %s134
      $region28: #{residual_block_pallas.1} parent=23 // pred_fallthru
        _
    $region24: #{residual_block_pallas.1} parent=5 // pred_fallthru
      _
    %p136 = scmp.le.s32.totalorder 1, %s9
    %p137 = scmp.lt.s32.totalorder %s9, 3
    %p138 = pnand %p136, %p137
    %p139 = pneg %p138
    // Predicated region
    $region29: #{residual_block_pallas.1} parent=5 // pred_check
      _
    $region30: #{residual_block_pallas.1} parent=5 // pred_check_branch
      %141 = sbr.rel (%p138) target = $region32
    $region31: #{residual_block_pallas.1} parent=5 // pred_region
      %s142 = ssub.s32 %s9, 1
      %p143 = scmp.lt.s32.totalorder %s14, 1
      %s144 = scalar_select %p143, %s14, 1
      %s145 = smul.addr %s144, 32
      %s146 = smul.addr %s145, 8
      %s147 = scalar_lea.vmem %s0, %s146
      %p148 = pneg %p35
      %p149 = pneg %p32
      %p150 = pneg %p56
      %p151 = pneg %p53
      %p152 = pneg %p77
      %p153 = pneg %p74
      %p154 = pneg %p103
      %p155 = pneg %p100
      %p156 = scmp.lt.s32.totalorder %s14, 1
      %s157 = scalar_select %p156, %s14, 1
      %s158 = smul.addr %s157, 32
      %s159 = smul.addr %s158, 8
      %s160 = scalar_lea.vmem %s3, %s159
      %p161 = scmp.lt.s32.totalorder %s14, 1
      %s162 = scalar_select %p161, %s14, 1
      %s163 = smul.addr %s162, 32
      %s164 = smul.addr %s163, 8
      %s165 = scalar_lea.vmem %s0, %s164
      %p166 = scmp.lt.s32.totalorder %s14, 1
      %s167 = scalar_select %p166, %s14, 1
      %s168 = smul.addr %s167, 32
      %s169 = smul.addr %s168, 8
      %s170 = scalar_lea.vmem %s3, %s169
      %v172 = vld [vmem:[%s165] sm:$0xff]
      %v173 = vld [vmem:[%s165 + $0x8] sm:$0xff]
      %v174 = vld [vmem:[%s165 + $0x10] sm:$0xff]
      %v175 = vld [vmem:[%s165 + $0x18] sm:$0xff]
      %v176 = vld [vmem:[%s165 + $0x20] sm:$0xff]
      %v177 = vld [vmem:[%s165 + $0x28] sm:$0xff]
      %v178 = vld [vmem:[%s165 + $0x30] sm:$0xff]
      %v179 = vld [vmem:[%s165 + $0x38] sm:$0xff]
      %v180 = vld [vmem:[%s165 + $0x40] sm:$0xff]
      %v181 = vld [vmem:[%s165 + $0x48] sm:$0xff]
      %v182 = vld [vmem:[%s165 + $0x50] sm:$0xff]
      %v183 = vld [vmem:[%s165 + $0x58] sm:$0xff]
      %v184 = vld [vmem:[%s165 + $0x60] sm:$0xff]
      %v185 = vld [vmem:[%s165 + $0x68] sm:$0xff]
      %v186 = vld [vmem:[%s165 + $0x70] sm:$0xff]
      %v187 = vld [vmem:[%s165 + $0x78] sm:$0xff]
      %v188 = vld [vmem:[%s165 + $0x80] sm:$0xff]
      %v189 = vld [vmem:[%s165 + $0x88] sm:$0xff]
      %v190 = vld [vmem:[%s165 + $0x90] sm:$0xff]
      %v191 = vld [vmem:[%s165 + $0x98] sm:$0xff]
      %v192 = vld [vmem:[%s165 + $0xa0] sm:$0xff]
      %v193 = vld [vmem:[%s165 + $0xa8] sm:$0xff]
      %v194 = vld [vmem:[%s165 + $0xb0] sm:$0xff]
      %v195 = vld [vmem:[%s165 + $0xb8] sm:$0xff]
      %v196 = vld [vmem:[%s165 + $0xc0] sm:$0xff]
      %v197 = vld [vmem:[%s165 + $0xc8] sm:$0xff]
      %v198 = vld [vmem:[%s165 + $0xd0] sm:$0xff]
      %v199 = vld [vmem:[%s165 + $0xd8] sm:$0xff]
      %v200 = vld [vmem:[%s165 + $0xe0] sm:$0xff]
      %v201 = vld [vmem:[%s165 + $0xe8] sm:$0xff]
      %v202 = vld [vmem:[%s165 + $0xf0] sm:$0xff]
      %v203 = vld [vmem:[%s165 + $0xf8] sm:$0xff]
      %v204 = vpack.c.bf16 %v172, %v172
      %v205 = vpack.c.bf16 %v173, %v173
      %v206 = vpack.c.bf16 %v174, %v174
      %v207 = vpack.c.bf16 %v175, %v175
      %v208 = vpack.c.bf16 %v176, %v176
      %v209 = vpack.c.bf16 %v177, %v177
      %v210 = vpack.c.bf16 %v178, %v178
      %v211 = vpack.c.bf16 %v179, %v179
      %v212 = vpack.c.bf16 %v180, %v180
      %v213 = vpack.c.bf16 %v181, %v181
      %v214 = vpack.c.bf16 %v182, %v182
      %v215 = vpack.c.bf16 %v183, %v183
      %v216 = vpack.c.bf16 %v184, %v184
      %v217 = vpack.c.bf16 %v185, %v185
      %v218 = vpack.c.bf16 %v186, %v186
      %v219 = vpack.c.bf16 %v187, %v187
      %v220 = vpack.c.bf16 %v188, %v188
      %v221 = vpack.c.bf16 %v189, %v189
      %v222 = vpack.c.bf16 %v190, %v190
      %v223 = vpack.c.bf16 %v191, %v191
      %v224 = vpack.c.bf16 %v192, %v192
      %v225 = vpack.c.bf16 %v193, %v193
      %v226 = vpack.c.bf16 %v194, %v194
      %v227 = vpack.c.bf16 %v195, %v195
      %v228 = vpack.c.bf16 %v196, %v196
      %v229 = vpack.c.bf16 %v197, %v197
      %v230 = vpack.c.bf16 %v198, %v198
      %v231 = vpack.c.bf16 %v199, %v199
      %v232 = vpack.c.bf16 %v200, %v200
      %v233 = vpack.c.bf16 %v201, %v201
      %v234 = vpack.c.bf16 %v202, %v202
      %v235 = vpack.c.bf16 %v203, %v203
      %v252 = vunpack.c.l.b16 %v204
      %v253 = vunpack.c.l.b16 %v206
      %v254 = vunpack.c.l.b16 %v208
      %v255 = vunpack.c.l.b16 %v210
      %v256 = vunpack.c.l.b16 %v212
      %v257 = vunpack.c.l.b16 %v214
      %v258 = vunpack.c.l.b16 %v216
      %v259 = vunpack.c.l.b16 %v218
      %v260 = vunpack.c.l.b16 %v220
      %v261 = vunpack.c.l.b16 %v222
      %v262 = vunpack.c.l.b16 %v224
      %v263 = vunpack.c.l.b16 %v226
      %v264 = vunpack.c.l.b16 %v228
      %v265 = vunpack.c.l.b16 %v230
      %v266 = vunpack.c.l.b16 %v232
      %v267 = vunpack.c.l.b16 %v234
      %v268 = vpack.c.b16 %v252, %v252
      %v269 = vpack.c.b16 %v253, %v253
      %v270 = vpack.c.b16 %v254, %v254
      %v271 = vpack.c.b16 %v255, %v255
      %v272 = vpack.c.b16 %v256, %v256
      %v273 = vpack.c.b16 %v257, %v257
      %v274 = vpack.c.b16 %v258, %v258
      %v275 = vpack.c.b16 %v259, %v259
      %v276 = vpack.c.b16 %v260, %v260
      %v277 = vpack.c.b16 %v261, %v261
      %v278 = vpack.c.b16 %v262, %v262
      %v279 = vpack.c.b16 %v263, %v263
      %v280 = vpack.c.b16 %v264, %v264
      %v281 = vpack.c.b16 %v265, %v265
      %v282 = vpack.c.b16 %v266, %v266
      %v283 = vpack.c.b16 %v267, %v267
      %v285 = vshrl.u32 %v268, 16
      %v288 = vshrl.u32 %v269, 16
      %v291 = vshrl.u32 %v270, 16
      %v294 = vshrl.u32 %v271, 16
      %v297 = vshrl.u32 %v272, 16
      %v300 = vshrl.u32 %v273, 16
      %v303 = vshrl.u32 %v274, 16
      %v306 = vshrl.u32 %v275, 16
      %v309 = vshrl.u32 %v276, 16
      %v312 = vshrl.u32 %v277, 16
      %v315 = vshrl.u32 %v278, 16
      %v318 = vshrl.u32 %v279, 16
      %v321 = vshrl.u32 %v280, 16
      %v324 = vshrl.u32 %v281, 16
      %v327 = vshrl.u32 %v282, 16
      %v330 = vshrl.u32 %v283, 16
      %v364 = vunpack.c.l.b16 %v205
      %v365 = vunpack.c.l.b16 %v207
      %v366 = vunpack.c.l.b16 %v209
      %v367 = vunpack.c.l.b16 %v211
      %v368 = vunpack.c.l.b16 %v213
      %v369 = vunpack.c.l.b16 %v215
      %v370 = vunpack.c.l.b16 %v217
      %v371 = vunpack.c.l.b16 %v219
      %v372 = vunpack.c.l.b16 %v221
      %v373 = vunpack.c.l.b16 %v223
      %v374 = vunpack.c.l.b16 %v225
      %v375 = vunpack.c.l.b16 %v227
      %v376 = vunpack.c.l.b16 %v229
      %v377 = vunpack.c.l.b16 %v231
      %v378 = vunpack.c.l.b16 %v233
      %v379 = vunpack.c.l.b16 %v235
      %v380 = vpack.c.b16 %v364, %v252
      %v381 = vpack.c.b16 %v365, %v253
      %v382 = vpack.c.b16 %v366, %v254
      %v383 = vpack.c.b16 %v367, %v255
      %v384 = vpack.c.b16 %v368, %v256
      %v385 = vpack.c.b16 %v369, %v257
      %v386 = vpack.c.b16 %v370, %v258
      %v387 = vpack.c.b16 %v371, %v259
      %v388 = vpack.c.b16 %v372, %v260
      %v389 = vpack.c.b16 %v373, %v261
      %v390 = vpack.c.b16 %v374, %v262
      %v391 = vpack.c.b16 %v375, %v263
      %v392 = vpack.c.b16 %v376, %v264
      %v393 = vpack.c.b16 %v377, %v265
      %v394 = vpack.c.b16 %v378, %v266
      %v395 = vpack.c.b16 %v379, %v267
      %v397 = vshrl.u32 %v380, 16
      %v399 = vrot.slane %v397, 7
      %v400 = vshll.u32 %v380, 16
      %v402 = vor.u32 %v399, %v400
      %v404 = vshrl.u32 %v381, 16
      %v406 = vrot.slane %v404, 7
      %v407 = vshll.u32 %v381, 16
      %v409 = vor.u32 %v406, %v407
      %v411 = vshrl.u32 %v382, 16
      %v413 = vrot.slane %v411, 7
      %v414 = vshll.u32 %v382, 16
      %v416 = vor.u32 %v413, %v414
      %v418 = vshrl.u32 %v383, 16
      %v420 = vrot.slane %v418, 7
      %v421 = vshll.u32 %v383, 16
      %v423 = vor.u32 %v420, %v421
      %v425 = vshrl.u32 %v384, 16
      %v427 = vrot.slane %v425, 7
      %v428 = vshll.u32 %v384, 16
      %v430 = vor.u32 %v427, %v428
      %v432 = vshrl.u32 %v385, 16
      %v434 = vrot.slane %v432, 7
      %v435 = vshll.u32 %v385, 16
      %v437 = vor.u32 %v434, %v435
      %v439 = vshrl.u32 %v386, 16
      %v441 = vrot.slane %v439, 7
      %v442 = vshll.u32 %v386, 16
      %v444 = vor.u32 %v441, %v442
      %v446 = vshrl.u32 %v387, 16
      %v448 = vrot.slane %v446, 7
      %v449 = vshll.u32 %v387, 16
      %v451 = vor.u32 %v448, %v449
      %v453 = vshrl.u32 %v388, 16
      %v455 = vrot.slane %v453, 7
      %v456 = vshll.u32 %v388, 16
      %v458 = vor.u32 %v455, %v456
      %v460 = vshrl.u32 %v389, 16
      %v462 = vrot.slane %v460, 7
      %v463 = vshll.u32 %v389, 16
      %v465 = vor.u32 %v462, %v463
      %v467 = vshrl.u32 %v390, 16
      %v469 = vrot.slane %v467, 7
      %v470 = vshll.u32 %v390, 16
      %v472 = vor.u32 %v469, %v470
      %v474 = vshrl.u32 %v391, 16
      %v476 = vrot.slane %v474, 7
      %v477 = vshll.u32 %v391, 16
      %v479 = vor.u32 %v476, %v477
      %v481 = vshrl.u32 %v392, 16
      %v483 = vrot.slane %v481, 7
      %v484 = vshll.u32 %v392, 16
      %v486 = vor.u32 %v483, %v484
      %v488 = vshrl.u32 %v393, 16
      %v490 = vrot.slane %v488, 7
      %v491 = vshll.u32 %v393, 16
      %v493 = vor.u32 %v490, %v491
      %v495 = vshrl.u32 %v394, 16
      %v497 = vrot.slane %v495, 7
      %v498 = vshll.u32 %v394, 16
      %v500 = vor.u32 %v497, %v498
      %v502 = vshrl.u32 %v395, 16
      %v504 = vrot.slane %v502, 7
      %v505 = vshll.u32 %v395, 16
      %v507 = vor.u32 %v504, %v505
      %v540 = vpack.c.b16 %v364, %v364
      %v541 = vpack.c.b16 %v365, %v365
      %v542 = vpack.c.b16 %v366, %v366
      %v543 = vpack.c.b16 %v367, %v367
      %v544 = vpack.c.b16 %v368, %v368
      %v545 = vpack.c.b16 %v369, %v369
      %v546 = vpack.c.b16 %v370, %v370
      %v547 = vpack.c.b16 %v371, %v371
      %v548 = vpack.c.b16 %v372, %v372
      %v549 = vpack.c.b16 %v373, %v373
      %v550 = vpack.c.b16 %v374, %v374
      %v551 = vpack.c.b16 %v375, %v375
      %v552 = vpack.c.b16 %v376, %v376
      %v553 = vpack.c.b16 %v377, %v377
      %v554 = vpack.c.b16 %v378, %v378
      %v555 = vpack.c.b16 %v379, %v379
      %v557 = vshll.u32 %v540, 16
      %v559 = vrot.slane %v557, 3
      %v561 = vshll.u32 %v541, 16
      %v563 = vrot.slane %v561, 3
      %v565 = vshll.u32 %v542, 16
      %v567 = vrot.slane %v565, 3
      %v569 = vshll.u32 %v543, 16
      %v571 = vrot.slane %v569, 3
      %v573 = vshll.u32 %v544, 16
      %v575 = vrot.slane %v573, 3
      %v577 = vshll.u32 %v545, 16
      %v579 = vrot.slane %v577, 3
      %v581 = vshll.u32 %v546, 16
      %v583 = vrot.slane %v581, 3
      %v585 = vshll.u32 %v547, 16
      %v587 = vrot.slane %v585, 3
      %v589 = vshll.u32 %v548, 16
      %v591 = vrot.slane %v589, 3
      %v593 = vshll.u32 %v549, 16
      %v595 = vrot.slane %v593, 3
      %v597 = vshll.u32 %v550, 16
      %v599 = vrot.slane %v597, 3
      %v601 = vshll.u32 %v551, 16
      %v603 = vrot.slane %v601, 3
      %v605 = vshll.u32 %v552, 16
      %v607 = vrot.slane %v605, 3
      %v609 = vshll.u32 %v553, 16
      %v611 = vrot.slane %v609, 3
      %v613 = vshll.u32 %v554, 16
      %v615 = vrot.slane %v613, 3
      %v617 = vshll.u32 %v555, 16
      %v619 = vrot.slane %v617, 3
      %vm636 = vcmask 1040384
      %vm637 = vsmask.f32 256
      %vm638 = vmand %vm636, %vm637
      %v639 = vsel %vm638, %v285, %v402
      %v640 = vsel %vm638, %v288, %v409
      %v641 = vsel %vm638, %v291, %v416
      %v642 = vsel %vm638, %v294, %v423
      %v643 = vsel %vm638, %v297, %v430
      %v644 = vsel %vm638, %v300, %v437
      %v645 = vsel %vm638, %v303, %v444
      %v646 = vsel %vm638, %v306, %v451
      %v647 = vsel %vm638, %v309, %v458
      %v648 = vsel %vm638, %v312, %v465
      %v649 = vsel %vm638, %v315, %v472
      %v650 = vsel %vm638, %v318, %v479
      %v651 = vsel %vm638, %v321, %v486
      %v652 = vsel %vm638, %v324, %v493
      %v653 = vsel %vm638, %v327, %v500
      %v654 = vsel %vm638, %v330, %v507
      %v655 = vsel %vm638, %v399, %v559
      %v656 = vsel %vm638, %v406, %v563
      %v657 = vsel %vm638, %v413, %v567
      %v658 = vsel %vm638, %v420, %v571
      %v659 = vsel %vm638, %v427, %v575
      %v660 = vsel %vm638, %v434, %v579
      %v661 = vsel %vm638, %v441, %v583
      %v662 = vsel %vm638, %v448, %v587
      %v663 = vsel %vm638, %v455, %v591
      %v664 = vsel %vm638, %v462, %v595
      %v665 = vsel %vm638, %v469, %v599
      %v666 = vsel %vm638, %v476, %v603
      %v667 = vsel %vm638, %v483, %v607
      %v668 = vsel %vm638, %v490, %v611
      %v669 = vsel %vm638, %v497, %v615
      %v670 = vsel %vm638, %v504, %v619
      %vm671 = vsmask.f32 7424
      %v673 = vshrl.u32 %v640, 16
      %v675 = vshll.u32 %v640, 16
      %v677 = vrot.slane %v675, 1
      %v678 = vor.u32 %v673, %v677
      %v680 = vshll.u32 %v656, 16
      %v682 = vrot.slane %v680, 1
      %v683 = vsel %vm671, %v678, %v682
      %v685 = vshrl.u32 %v639, 16
      %v687 = vshll.u32 %v639, 16
      %v689 = vrot.slane %v687, 1
      %v690 = vor.u32 %v685, %v689
      %v692 = vshll.u32 %v655, 16
      %v694 = vrot.slane %v692, 1
      %v695 = vsel %vm671, %v690, %v694
      %v697 = vshrl.u32 %v641, 16
      %v699 = vshll.u32 %v641, 16
      %v701 = vrot.slane %v699, 1
      %v702 = vor.u32 %v697, %v701
      %v704 = vshll.u32 %v657, 16
      %v706 = vrot.slane %v704, 1
      %v707 = vsel %vm671, %v702, %v706
      %v709 = vshrl.u32 %v642, 16
      %v711 = vshll.u32 %v642, 16
      %v713 = vrot.slane %v711, 1
      %v714 = vor.u32 %v709, %v713
      %v716 = vshll.u32 %v658, 16
      %v718 = vrot.slane %v716, 1
      %v719 = vsel %vm671, %v714, %v718
      %v721 = vshrl.u32 %v643, 16
      %v723 = vshll.u32 %v643, 16
      %v725 = vrot.slane %v723, 1
      %v726 = vor.u32 %v721, %v725
      %v728 = vshll.u32 %v659, 16
      %v730 = vrot.slane %v728, 1
      %v731 = vsel %vm671, %v726, %v730
      %v733 = vshrl.u32 %v644, 16
      %v735 = vshll.u32 %v644, 16
      %v737 = vrot.slane %v735, 1
      %v738 = vor.u32 %v733, %v737
      %v740 = vshll.u32 %v660, 16
      %v742 = vrot.slane %v740, 1
      %v743 = vsel %vm671, %v738, %v742
      %v745 = vshrl.u32 %v645, 16
      %v747 = vshll.u32 %v645, 16
      %v749 = vrot.slane %v747, 1
      %v750 = vor.u32 %v745, %v749
      %v752 = vshll.u32 %v661, 16
      %v754 = vrot.slane %v752, 1
      %v755 = vsel %vm671, %v750, %v754
      %v757 = vshrl.u32 %v646, 16
      %v759 = vshll.u32 %v646, 16
      %v761 = vrot.slane %v759, 1
      %v762 = vor.u32 %v757, %v761
      %v764 = vshll.u32 %v662, 16
      %v766 = vrot.slane %v764, 1
      %v767 = vsel %vm671, %v762, %v766
      %v769 = vshrl.u32 %v647, 16
      %v771 = vshll.u32 %v647, 16
      %v773 = vrot.slane %v771, 1
      %v774 = vor.u32 %v769, %v773
      %v776 = vshll.u32 %v663, 16
      %v778 = vrot.slane %v776, 1
      %v779 = vsel %vm671, %v774, %v778
      %v781 = vshrl.u32 %v648, 16
      %v783 = vshll.u32 %v648, 16
      %v785 = vrot.slane %v783, 1
      %v786 = vor.u32 %v781, %v785
      %v788 = vshll.u32 %v664, 16
      %v790 = vrot.slane %v788, 1
      %v791 = vsel %vm671, %v786, %v790
      %v793 = vshrl.u32 %v649, 16
      %v795 = vshll.u32 %v649, 16
      %v797 = vrot.slane %v795, 1
      %v798 = vor.u32 %v793, %v797
      %v800 = vshll.u32 %v665, 16
      %v802 = vrot.slane %v800, 1
      %v803 = vsel %vm671, %v798, %v802
      %v805 = vshrl.u32 %v650, 16
      %v807 = vshll.u32 %v650, 16
      %v809 = vrot.slane %v807, 1
      %v810 = vor.u32 %v805, %v809
      %v812 = vshll.u32 %v666, 16
      %v814 = vrot.slane %v812, 1
      %v815 = vsel %vm671, %v810, %v814
      %v817 = vshrl.u32 %v651, 16
      %v819 = vshll.u32 %v651, 16
      %v821 = vrot.slane %v819, 1
      %v822 = vor.u32 %v817, %v821
      %v824 = vshll.u32 %v667, 16
      %v826 = vrot.slane %v824, 1
      %v827 = vsel %vm671, %v822, %v826
      %v829 = vshrl.u32 %v652, 16
      %v831 = vshll.u32 %v652, 16
      %v833 = vrot.slane %v831, 1
      %v834 = vor.u32 %v829, %v833
      %v836 = vshll.u32 %v668, 16
      %v838 = vrot.slane %v836, 1
      %v839 = vsel %vm671, %v834, %v838
      %v841 = vshrl.u32 %v653, 16
      %v843 = vshll.u32 %v653, 16
      %v845 = vrot.slane %v843, 1
      %v846 = vor.u32 %v841, %v845
      %v848 = vshll.u32 %v669, 16
      %v850 = vrot.slane %v848, 1
      %v851 = vsel %vm671, %v846, %v850
      %852 = vrot.lane.b32.xlu0 %v683, 4
      %v853 = vpop.permute.xlu0 %852
      %854 = vrot.lane.b32.xlu0 %v695, 4
      %v855 = vpop.permute.xlu0 %854
      %856 = vrot.lane.b32.xlu0 %v707, 4
      %v857 = vpop.permute.xlu0 %856
      %858 = vrot.lane.b32.xlu0 %v719, 4
      %v859 = vpop.permute.xlu0 %858
      %860 = vrot.lane.b32.xlu0 %v731, 4
      %v861 = vpop.permute.xlu0 %860
      %862 = vrot.lane.b32.xlu0 %v743, 4
      %v863 = vpop.permute.xlu0 %862
      %864 = vrot.lane.b32.xlu0 %v755, 4
      %v865 = vpop.permute.xlu0 %864
      %866 = vrot.lane.b32.xlu0 %v767, 4
      %v867 = vpop.permute.xlu0 %866
      %868 = vrot.lane.b32.xlu0 %v779, 4
      %v869 = vpop.permute.xlu0 %868
      %870 = vrot.lane.b32.xlu0 %v791, 4
      %v871 = vpop.permute.xlu0 %870
      %872 = vrot.lane.b32.xlu0 %v803, 4
      %v873 = vpop.permute.xlu0 %872
      %874 = vrot.lane.b32.xlu0 %v815, 4
      %v875 = vpop.permute.xlu0 %874
      %876 = vrot.lane.b32.xlu0 %v827, 4
      %v877 = vpop.permute.xlu0 %876
      %878 = vrot.lane.b32.xlu0 %v839, 4
      %v879 = vpop.permute.xlu0 %878
      %880 = vrot.lane.b32.xlu0 %v851, 4
      %v881 = vpop.permute.xlu0 %880
      %vm912 = vcmask 1046528
      %v913 = vrot.slane %v640, 1
      %v914 = vrot.slane %v656, 1
      %v915 = vsel %vm912, %v913, %v914
      %v916 = vrot.slane %v639, 1
      %v917 = vrot.slane %v655, 1
      %v918 = vsel %vm912, %v916, %v917
      %v919 = vrot.slane %v641, 1
      %v920 = vrot.slane %v657, 1
      %v921 = vsel %vm912, %v919, %v920
      %v922 = vrot.slane %v642, 1
      %v923 = vrot.slane %v658, 1
      %v924 = vsel %vm912, %v922, %v923
      %v925 = vrot.slane %v643, 1
      %v926 = vrot.slane %v659, 1
      %v927 = vsel %vm912, %v925, %v926
      %v928 = vrot.slane %v644, 1
      %v929 = vrot.slane %v660, 1
      %v930 = vsel %vm912, %v928, %v929
      %v931 = vrot.slane %v645, 1
      %v932 = vrot.slane %v661, 1
      %v933 = vsel %vm912, %v931, %v932
      %v934 = vrot.slane %v646, 1
      %v935 = vrot.slane %v662, 1
      %v936 = vsel %vm912, %v934, %v935
      %v937 = vrot.slane %v647, 1
      %v938 = vrot.slane %v663, 1
      %v939 = vsel %vm912, %v937, %v938
      %v940 = vrot.slane %v648, 1
      %v941 = vrot.slane %v664, 1
      %v942 = vsel %vm912, %v940, %v941
      %v943 = vrot.slane %v649, 1
      %v944 = vrot.slane %v665, 1
      %v945 = vsel %vm912, %v943, %v944
      %v946 = vrot.slane %v650, 1
      %v947 = vrot.slane %v666, 1
      %v948 = vsel %vm912, %v946, %v947
      %v949 = vrot.slane %v651, 1
      %v950 = vrot.slane %v667, 1
      %v951 = vsel %vm912, %v949, %v950
      %v952 = vrot.slane %v652, 1
      %v953 = vrot.slane %v668, 1
      %v954 = vsel %vm912, %v952, %v953
      %v955 = vrot.slane %v653, 1
      %v956 = vrot.slane %v669, 1
      %v957 = vsel %vm912, %v955, %v956
      %958 = vrot.lane.b32.xlu0 %v915, 8
      %v959 = vpop.permute.xlu0 %958
      %960 = vrot.lane.b32.xlu0 %v918, 8
      %v961 = vpop.permute.xlu0 %960
      %962 = vrot.lane.b32.xlu0 %v921, 8
      %v963 = vpop.permute.xlu0 %962
      %964 = vrot.lane.b32.xlu0 %v924, 8
      %v965 = vpop.permute.xlu0 %964
      %966 = vrot.lane.b32.xlu0 %v927, 8
      %v967 = vpop.permute.xlu0 %966
      %968 = vrot.lane.b32.xlu0 %v930, 8
      %v969 = vpop.permute.xlu0 %968
      %970 = vrot.lane.b32.xlu0 %v933, 8
      %v971 = vpop.permute.xlu0 %970
      %972 = vrot.lane.b32.xlu0 %v936, 8
      %v973 = vpop.permute.xlu0 %972
      %974 = vrot.lane.b32.xlu0 %v939, 8
      %v975 = vpop.permute.xlu0 %974
      %976 = vrot.lane.b32.xlu0 %v942, 8
      %v977 = vpop.permute.xlu0 %976
      %978 = vrot.lane.b32.xlu0 %v945, 8
      %v979 = vpop.permute.xlu0 %978
      %980 = vrot.lane.b32.xlu0 %v948, 8
      %v981 = vpop.permute.xlu0 %980
      %982 = vrot.lane.b32.xlu0 %v951, 8
      %v983 = vpop.permute.xlu0 %982
      %984 = vrot.lane.b32.xlu0 %v954, 8
      %v985 = vpop.permute.xlu0 %984
      %986 = vrot.lane.b32.xlu0 %v957, 8
      %v987 = vpop.permute.xlu0 %986
      %vm988 = vcmask 31744
      %v990 = vsel %vm988, %v640, %v853
      %v992 = vsel %vm988, %v639, %v855
      %v994 = vsel %vm988, %v641, %v857
      %v996 = vsel %vm988, %v642, %v859
      %v998 = vsel %vm988, %v643, %v861
      %v1000 = vsel %vm988, %v644, %v863
      %v1002 = vsel %vm988, %v645, %v865
      %v1004 = vsel %vm988, %v646, %v867
      %v1006 = vsel %vm988, %v647, %v869
      %v1008 = vsel %vm988, %v648, %v871
      %v1010 = vsel %vm988, %v649, %v873
      %v1012 = vsel %vm988, %v650, %v875
      %v1014 = vsel %vm988, %v651, %v877
      %v1016 = vsel %vm988, %v652, %v879
      %v1018 = vsel %vm988, %v653, %v881
      %vm1019 = vcmask 64512
      %v1021 = vsel %vm1019, %v990, %v959
      %v1023 = vsel %vm1019, %v992, %v961
      %v1025 = vsel %vm1019, %v994, %v963
      %v1027 = vsel %vm1019, %v996, %v965
      %v1029 = vsel %vm1019, %v998, %v967
      %v1031 = vsel %vm1019, %v1000, %v969
      %v1033 = vsel %vm1019, %v1002, %v971
      %v1035 = vsel %vm1019, %v1004, %v973
      %v1037 = vsel %vm1019, %v1006, %v975
      %v1039 = vsel %vm1019, %v1008, %v977
      %v1041 = vsel %vm1019, %v1010, %v979
      %v1043 = vsel %vm1019, %v1012, %v981
      %v1045 = vsel %vm1019, %v1014, %v983
      %v1047 = vsel %vm1019, %v1016, %v985
      %v1049 = vsel %vm1019, %v1018, %v987
      %v1050 = vld [vmem:[%s1] sm:$0xf]
      %v1051 = vld [vmem:[%s1 + $0x4] sm:$0x3]
      %v1053 = vshrl.u32 %v654, 16
      %v1055 = vshll.u32 %v654, 16
      %v1057 = vrot.slane %v1055, 1
      %v1058 = vor.u32 %v1053, %v1057
      %v1060 = vshll.u32 %v670, 16
      %v1062 = vrot.slane %v1060, 1
      %v1063 = vsel %vm671, %v1058, %v1062
      %1064 = vrot.lane.b32.xlu0 %v1063, 4
      %v1065 = vpop.permute.xlu0 %1064
      %v1068 = vrot.slane %v654, 1
      %v1069 = vrot.slane %v670, 1
      %v1070 = vsel %vm912, %v1068, %v1069
      %1071 = vrot.lane.b32.xlu0 %v1070, 8
      %v1072 = vpop.permute.xlu0 %1071
      %v1074 = vsel %vm988, %v654, %v1065
      %v1076 = vsel %vm1019, %v1074, %v1072
      %s1077 = scalar_lea.vmem %s1, 8
      %v1078 = vld [vmem:[%s1077] sm:$0xf]
      %v1079 = vld [vmem:[%s1077 + $0x4] sm:$0x3]
      %v1082 = vunpack.c.l.b16 %v1078
      %v1083 = vunpack.c.l.b16 %v1079
      %v1084 = vpack.c.b16 %v1083, %v1082
      %vm1085 = vcmask 97280
      %v1086 = vsel %vm1085, %v1023, 0
      %v1088 = vsel %vm1085, %v1021, 0
      %v1090 = vsel %vm1085, %v1025, 0
      %v1092 = vsel %vm1085, %v1027, 0
      %v1094 = vsel %vm1085, %v1029, 0
      %v1096 = vsel %vm1085, %v1031, 0
      %v1098 = vsel %vm1085, %v1033, 0
      %v1100 = vsel %vm1085, %v1035, 0
      %v1102 = vsel %vm1085, %v1037, 0
      %v1104 = vsel %vm1085, %v1039, 0
      %v1106 = vsel %vm1085, %v1041, 0
      %v1108 = vsel %vm1085, %v1043, 0
      %v1110 = vsel %vm1085, %v1045, 0
      %v1112 = vsel %vm1085, %v1047, 0
      %v1114 = vsel %vm1085, %v1049, 0
      %v1116 = vsel %vm1085, %v1076, 0
      %vm1118 = vcmask 1045504
      %v1120 = vsel %vm1118, %v1084, 0
      %1122 = vmatpush.bf16.msra.mxu0 0
      %1123 = vmatpush.bf16.msra.mxu0 0
      %1124 = vmatpush.bf16.msra.mxu0 0
      %1125 = vmatpush.bf16.msra.mxu0 0
      %1126 = vmatpush.bf16.msra.mxu0 0
      %1127 = vmatpush.bf16.msra.mxu0 0
      %1128 = vmatpush.bf16.msra.mxu0 0
      %1129 = vmatpush.bf16.msra.mxu0 %v1120
      %1130 = vmatmul.bf16.gmra.mxu0 %v1086
      %v1131 = vpop.f32.mrf.mxu0
      %v1132 = vadd.f32 0.0, %v1131
      %v1133 = vpop.f32.mrf.mxu0
      %v1134 = vadd.f32 0.0, %v1133
      %1135 = vmatmul.bf16.gmra.mxu0 %v1088
      %v1136 = vpop.f32.mrf.mxu0
      %v1137 = vadd.f32 0.0, %v1136
      %v1138 = vpop.f32.mrf.mxu0
      %v1139 = vadd.f32 0.0, %v1138
      %1140 = vmatmul.bf16.gmra.mxu0 %v1090
      %v1141 = vpop.f32.mrf.mxu0
      %v1142 = vadd.f32 0.0, %v1141
      %v1143 = vpop.f32.mrf.mxu0
      %v1144 = vadd.f32 0.0, %v1143
      %1145 = vmatmul.bf16.gmra.mxu0 %v1092
      %v1146 = vpop.f32.mrf.mxu0
      %v1147 = vadd.f32 0.0, %v1146
      %v1148 = vpop.f32.mrf.mxu0
      %v1149 = vadd.f32 0.0, %v1148
      %1150 = vmatmul.bf16.gmra.mxu0 %v1094
      %v1151 = vpop.f32.mrf.mxu0
      %v1152 = vadd.f32 0.0, %v1151
      %v1153 = vpop.f32.mrf.mxu0
      %v1154 = vadd.f32 0.0, %v1153
      %1155 = vmatmul.bf16.gmra.mxu0 %v1096
      %v1156 = vpop.f32.mrf.mxu0
      %v1157 = vadd.f32 0.0, %v1156
      %v1158 = vpop.f32.mrf.mxu0
      %v1159 = vadd.f32 0.0, %v1158
      %1160 = vmatmul.bf16.gmra.mxu0 %v1098
      %v1161 = vpop.f32.mrf.mxu0
      %v1162 = vadd.f32 0.0, %v1161
      %v1163 = vpop.f32.mrf.mxu0
      %v1164 = vadd.f32 0.0, %v1163
      %1165 = vmatmul.bf16.gmra.mxu0 %v1100
      %v1166 = vpop.f32.mrf.mxu0
      %v1167 = vadd.f32 0.0, %v1166
      %v1168 = vpop.f32.mrf.mxu0
      %v1169 = vadd.f32 0.0, %v1168
      %1170 = vmatmul.bf16.gmra.mxu0 %v1102
      %v1171 = vpop.f32.mrf.mxu0
      %v1172 = vadd.f32 0.0, %v1171
      %v1173 = vpop.f32.mrf.mxu0
      %v1174 = vadd.f32 0.0, %v1173
      %1175 = vmatmul.bf16.gmra.mxu0 %v1104
      %v1176 = vpop.f32.mrf.mxu0
      %v1177 = vadd.f32 0.0, %v1176
      %v1178 = vpop.f32.mrf.mxu0
      %v1179 = vadd.f32 0.0, %v1178
      %1180 = vmatmul.bf16.gmra.mxu0 %v1106
      %v1181 = vpop.f32.mrf.mxu0
      %v1182 = vadd.f32 0.0, %v1181
      %v1183 = vpop.f32.mrf.mxu0
      %v1184 = vadd.f32 0.0, %v1183
      %1185 = vmatmul.bf16.gmra.mxu0 %v1108
      %v1186 = vpop.f32.mrf.mxu0
      %v1187 = vadd.f32 0.0, %v1186
      %v1188 = vpop.f32.mrf.mxu0
      %v1189 = vadd.f32 0.0, %v1188
      %1190 = vmatmul.bf16.gmra.mxu0 %v1110
      %v1191 = vpop.f32.mrf.mxu0
      %v1192 = vadd.f32 0.0, %v1191
      %v1193 = vpop.f32.mrf.mxu0
      %v1194 = vadd.f32 0.0, %v1193
      %1195 = vmatmul.bf16.gmra.mxu0 %v1112
      %v1196 = vpop.f32.mrf.mxu0
      %v1197 = vadd.f32 0.0, %v1196
      %v1198 = vpop.f32.mrf.mxu0
      %v1199 = vadd.f32 0.0, %v1198
      %1200 = vmatmul.bf16.gmra.mxu0 %v1114
      %v1201 = vpop.f32.mrf.mxu0
      %v1202 = vadd.f32 0.0, %v1201
      %v1203 = vpop.f32.mrf.mxu0
      %v1204 = vadd.f32 0.0, %v1203
      %1205 = vmatmul.bf16.gmra.mxu0 %v1116
      %v1206 = vpop.f32.mrf.mxu0
      %v1207 = vadd.f32 0.0, %v1206
      %v1208 = vpop.f32.mrf.mxu0
      %v1209 = vadd.f32 0.0, %v1208
      %1210 = vdwg.mxu0
      %v1213 = vunpack.c.l.b16 %v1050
      %v1214 = vunpack.c.l.b16 %v1051
      %v1215 = vpack.c.b16 %v1214, %v1213
      %v1217 = vsel %vm1118, %v1215, 0
      %1219 = vmatpush.bf16.msra.mxu0 0
      %1220 = vmatpush.bf16.msra.mxu0 0
      %1221 = vmatpush.bf16.msra.mxu0 0
      %1222 = vmatpush.bf16.msra.mxu0 0
      %1223 = vmatpush.bf16.msra.mxu0 0
      %1224 = vmatpush.bf16.msra.mxu0 0
      %1225 = vmatpush.bf16.msra.mxu0 0
      %1226 = vmatpush.bf16.msra.mxu0 %v1217
      %1227 = vmatmul.bf16.gmra.mxu0 %v1088
      %v1228 = vpop.f32.mrf.mxu0
      %v1229 = vadd.f32 %v1132, %v1228
      %v1230 = vpop.f32.mrf.mxu0
      %v1231 = vadd.f32 %v1134, %v1230
      %1232 = vmatmul.bf16.gmra.mxu0 %v1086
      %v1233 = vpop.f32.mrf.mxu0
      %v1234 = vadd.f32 %v1137, %v1233
      %v1235 = vpop.f32.mrf.mxu0
      %v1236 = vadd.f32 %v1139, %v1235
      %1237 = vmatmul.bf16.gmra.mxu0 %v1088
      %v1238 = vpop.f32.mrf.mxu0
      %v1239 = vadd.f32 %v1142, %v1238
      %v1240 = vpop.f32.mrf.mxu0
      %v1241 = vadd.f32 %v1144, %v1240
      %1242 = vmatmul.bf16.gmra.mxu0 %v1090
      %v1243 = vpop.f32.mrf.mxu0
      %v1244 = vadd.f32 %v1147, %v1243
      %v1245 = vpop.f32.mrf.mxu0
      %v1246 = vadd.f32 %v1149, %v1245
      %1247 = vmatmul.bf16.gmra.mxu0 %v1092
      %v1248 = vpop.f32.mrf.mxu0
      %v1249 = vadd.f32 %v1152, %v1248
      %v1250 = vpop.f32.mrf.mxu0
      %v1251 = vadd.f32 %v1154, %v1250
      %1252 = vmatmul.bf16.gmra.mxu0 %v1094
      %v1253 = vpop.f32.mrf.mxu0
      %v1254 = vadd.f32 %v1157, %v1253
      %v1255 = vpop.f32.mrf.mxu0
      %v1256 = vadd.f32 %v1159, %v1255
      %1257 = vmatmul.bf16.gmra.mxu0 %v1096
      %v1258 = vpop.f32.mrf.mxu0
      %v1259 = vadd.f32 %v1162, %v1258
      %v1260 = vpop.f32.mrf.mxu0
      %v1261 = vadd.f32 %v1164, %v1260
      %1262 = vmatmul.bf16.gmra.mxu0 %v1098
      %v1263 = vpop.f32.mrf.mxu0
      %v1264 = vadd.f32 %v1167, %v1263
      %v1265 = vpop.f32.mrf.mxu0
      %v1266 = vadd.f32 %v1169, %v1265
      %1267 = vmatmul.bf16.gmra.mxu0 %v1100
      %v1268 = vpop.f32.mrf.mxu0
      %v1269 = vadd.f32 %v1172, %v1268
      %v1270 = vpop.f32.mrf.mxu0
      %v1271 = vadd.f32 %v1174, %v1270
      %1272 = vmatmul.bf16.gmra.mxu0 %v1102
      %v1273 = vpop.f32.mrf.mxu0
      %v1274 = vadd.f32 %v1177, %v1273
      %v1275 = vpop.f32.mrf.mxu0
      %v1276 = vadd.f32 %v1179, %v1275
      %1277 = vmatmul.bf16.gmra.mxu0 %v1104
      %v1278 = vpop.f32.mrf.mxu0
      %v1279 = vadd.f32 %v1182, %v1278
      %v1280 = vpop.f32.mrf.mxu0
      %v1281 = vadd.f32 %v1184, %v1280
      %1282 = vmatmul.bf16.gmra.mxu0 %v1106
      %v1283 = vpop.f32.mrf.mxu0
      %v1284 = vadd.f32 %v1187, %v1283
      %v1285 = vpop.f32.mrf.mxu0
      %v1286 = vadd.f32 %v1189, %v1285
      %1287 = vmatmul.bf16.gmra.mxu0 %v1108
      %v1288 = vpop.f32.mrf.mxu0
      %v1289 = vadd.f32 %v1192, %v1288
      %v1290 = vpop.f32.mrf.mxu0
      %v1291 = vadd.f32 %v1194, %v1290
      %1292 = vmatmul.bf16.gmra.mxu0 %v1110
      %v1293 = vpop.f32.mrf.mxu0
      %v1294 = vadd.f32 %v1197, %v1293
      %v1295 = vpop.f32.mrf.mxu0
      %v1296 = vadd.f32 %v1199, %v1295
      %1297 = vmatmul.bf16.gmra.mxu0 %v1112
      %v1298 = vpop.f32.mrf.mxu0
      %v1299 = vadd.f32 %v1202, %v1298
      %v1300 = vpop.f32.mrf.mxu0
      %v1301 = vadd.f32 %v1204, %v1300
      %1302 = vmatmul.bf16.gmra.mxu0 %v1114
      %v1303 = vpop.f32.mrf.mxu0
      %v1304 = vadd.f32 %v1207, %v1303
      %v1305 = vpop.f32.mrf.mxu0
      %v1306 = vadd.f32 %v1209, %v1305
      %1307 = vdwg.mxu0
      %s1308 = scalar_lea.vmem %s1, 16
      %v1309 = vld [vmem:[%s1308] sm:$0xf]
      %v1310 = vld [vmem:[%s1308 + $0x4] sm:$0x3]
      %v1313 = vunpack.c.l.b16 %v1309
      %v1314 = vunpack.c.l.b16 %v1310
      %v1315 = vpack.c.b16 %v1314, %v1313
      %v1317 = vsel %vm1118, %v1315, 0
      %1319 = vmatpush.bf16.msra.mxu0 0
      %1320 = vmatpush.bf16.msra.mxu0 0
      %1321 = vmatpush.bf16.msra.mxu0 0
      %1322 = vmatpush.bf16.msra.mxu0 0
      %1323 = vmatpush.bf16.msra.mxu0 0
      %1324 = vmatpush.bf16.msra.mxu0 0
      %1325 = vmatpush.bf16.msra.mxu0 0
      %1326 = vmatpush.bf16.msra.mxu0 %v1317
      %1327 = vmatmul.bf16.gmra.mxu0 %v1088
      %v1328 = vpop.f32.mrf.mxu0
      %v1329 = vadd.f32 0.0, %v1328
      %v1330 = vpop.f32.mrf.mxu0
      %v1331 = vadd.f32 0.0, %v1330
      %1332 = vmatmul.bf16.gmra.mxu0 %v1090
      %v1333 = vpop.f32.mrf.mxu0
      %v1334 = vadd.f32 0.0, %v1333
      %v1335 = vpop.f32.mrf.mxu0
      %v1336 = vadd.f32 0.0, %v1335
      %1337 = vmatmul.bf16.gmra.mxu0 %v1092
      %v1338 = vpop.f32.mrf.mxu0
      %v1339 = vadd.f32 0.0, %v1338
      %v1340 = vpop.f32.mrf.mxu0
      %v1341 = vadd.f32 0.0, %v1340
      %1342 = vmatmul.bf16.gmra.mxu0 %v1094
      %v1343 = vpop.f32.mrf.mxu0
      %v1344 = vadd.f32 0.0, %v1343
      %v1345 = vpop.f32.mrf.mxu0
      %v1346 = vadd.f32 0.0, %v1345
      %1347 = vmatmul.bf16.gmra.mxu0 %v1096
      %v1348 = vpop.f32.mrf.mxu0
      %v1349 = vadd.f32 0.0, %v1348
      %v1350 = vpop.f32.mrf.mxu0
      %v1351 = vadd.f32 0.0, %v1350
      %1352 = vmatmul.bf16.gmra.mxu0 %v1098
      %v1353 = vpop.f32.mrf.mxu0
      %v1354 = vadd.f32 0.0, %v1353
      %v1355 = vpop.f32.mrf.mxu0
      %v1356 = vadd.f32 0.0, %v1355
      %1357 = vmatmul.bf16.gmra.mxu0 %v1100
      %v1358 = vpop.f32.mrf.mxu0
      %v1359 = vadd.f32 0.0, %v1358
      %v1360 = vpop.f32.mrf.mxu0
      %v1361 = vadd.f32 0.0, %v1360
      %1362 = vmatmul.bf16.gmra.mxu0 %v1102
      %v1363 = vpop.f32.mrf.mxu0
      %v1364 = vadd.f32 0.0, %v1363
      %v1365 = vpop.f32.mrf.mxu0
      %v1366 = vadd.f32 0.0, %v1365
      %1367 = vmatmul.bf16.gmra.mxu0 %v1104
      %v1368 = vpop.f32.mrf.mxu0
      %v1369 = vadd.f32 0.0, %v1368
      %v1370 = vpop.f32.mrf.mxu0
      %v1371 = vadd.f32 0.0, %v1370
      %1372 = vmatmul.bf16.gmra.mxu0 %v1106
      %v1373 = vpop.f32.mrf.mxu0
      %v1374 = vadd.f32 0.0, %v1373
      %v1375 = vpop.f32.mrf.mxu0
      %v1376 = vadd.f32 0.0, %v1375
      %1377 = vmatmul.bf16.gmra.mxu0 %v1108
      %v1378 = vpop.f32.mrf.mxu0
      %v1379 = vadd.f32 0.0, %v1378
      %v1380 = vpop.f32.mrf.mxu0
      %v1381 = vadd.f32 0.0, %v1380
      %1382 = vmatmul.bf16.gmra.mxu0 %v1110
      %v1383 = vpop.f32.mrf.mxu0
      %v1384 = vadd.f32 0.0, %v1383
      %v1385 = vpop.f32.mrf.mxu0
      %v1386 = vadd.f32 0.0, %v1385
      %1387 = vmatmul.bf16.gmra.mxu0 %v1112
      %v1388 = vpop.f32.mrf.mxu0
      %v1389 = vadd.f32 0.0, %v1388
      %v1390 = vpop.f32.mrf.mxu0
      %v1391 = vadd.f32 0.0, %v1390
      %1392 = vmatmul.bf16.gmra.mxu0 %v1114
      %v1393 = vpop.f32.mrf.mxu0
      %v1394 = vadd.f32 0.0, %v1393
      %v1395 = vpop.f32.mrf.mxu0
      %v1396 = vadd.f32 0.0, %v1395
      %1397 = vmatmul.bf16.gmra.mxu0 %v1116
      %v1398 = vpop.f32.mrf.mxu0
      %v1399 = vadd.f32 0.0, %v1398
      %v1400 = vpop.f32.mrf.mxu0
      %v1401 = vadd.f32 0.0, %v1400
      %1402 = vmatmul.bf16.gmra.mxu0 %v1114
      %v1403 = vpop.f32.mrf.mxu0
      %v1404 = vadd.f32 0.0, %v1403
      %v1405 = vpop.f32.mrf.mxu0
      %v1406 = vadd.f32 0.0, %v1405
      %1407 = vdwg.mxu0
      %v1408 = vadd.f32 %v1229, %v1329
      %v1409 = vadd.f32 %v1231, %v1331
      %v1410 = vadd.f32 %v1234, %v1334
      %v1411 = vadd.f32 %v1236, %v1336
      %v1412 = vadd.f32 %v1239, %v1339
      %v1413 = vadd.f32 %v1241, %v1341
      %v1414 = vadd.f32 %v1244, %v1344
      %v1415 = vadd.f32 %v1246, %v1346
      %v1416 = vadd.f32 %v1249, %v1349
      %v1417 = vadd.f32 %v1251, %v1351
      %v1418 = vadd.f32 %v1254, %v1354
      %v1419 = vadd.f32 %v1256, %v1356
      %v1420 = vadd.f32 %v1259, %v1359
      %v1421 = vadd.f32 %v1261, %v1361
      %v1422 = vadd.f32 %v1264, %v1364
      %v1423 = vadd.f32 %v1266, %v1366
      %v1424 = vadd.f32 %v1269, %v1369
      %v1425 = vadd.f32 %v1271, %v1371
      %v1426 = vadd.f32 %v1274, %v1374
      %v1427 = vadd.f32 %v1276, %v1376
      %v1428 = vadd.f32 %v1279, %v1379
      %v1429 = vadd.f32 %v1281, %v1381
      %v1430 = vadd.f32 %v1284, %v1384
      %v1431 = vadd.f32 %v1286, %v1386
      %v1432 = vadd.f32 %v1289, %v1389
      %v1433 = vadd.f32 %v1291, %v1391
      %v1434 = vadd.f32 %v1294, %v1394
      %v1435 = vadd.f32 %v1296, %v1396
      %v1436 = vadd.f32 %v1299, %v1399
      %v1437 = vadd.f32 %v1301, %v1401
      %v1438 = vadd.f32 %v1304, %v1404
      %v1439 = vadd.f32 %v1306, %v1406
      %v1440 = vsel %vm988, %v1408, 0.0
      %v1441 = vsel %vm988, %v1409, 0.0
      %v1442 = vadd.f32 %v1440, %v1441
      %v1443 = vsel %vm988, %v1410, 0.0
      %v1444 = vadd.f32 %v1442, %v1443
      %v1445 = vsel %vm988, %v1411, 0.0
      %v1446 = vadd.f32 %v1444, %v1445
      %v1447 = vsel %vm988, %v1412, 0.0
      %v1448 = vadd.f32 %v1446, %v1447
      %v1449 = vsel %vm988, %v1413, 0.0
      %v1450 = vadd.f32 %v1448, %v1449
      %v1451 = vsel %vm988, %v1414, 0.0
      %v1452 = vadd.f32 %v1450, %v1451
      %v1453 = vsel %vm988, %v1415, 0.0
      %v1454 = vadd.f32 %v1452, %v1453
      %v1455 = vsel %vm988, %v1416, 0.0
      %v1456 = vadd.f32 %v1454, %v1455
      %v1457 = vsel %vm988, %v1417, 0.0
      %v1458 = vadd.f32 %v1456, %v1457
      %v1459 = vsel %vm988, %v1418, 0.0
      %v1460 = vadd.f32 %v1458, %v1459
      %v1461 = vsel %vm988, %v1419, 0.0
      %v1462 = vadd.f32 %v1460, %v1461
      %v1463 = vsel %vm988, %v1420, 0.0
      %v1464 = vadd.f32 %v1462, %v1463
      %v1465 = vsel %vm988, %v1421, 0.0
      %v1466 = vadd.f32 %v1464, %v1465
      %v1467 = vsel %vm988, %v1422, 0.0
      %v1468 = vadd.f32 %v1466, %v1467
      %v1469 = vsel %vm988, %v1423, 0.0
      %v1470 = vadd.f32 %v1468, %v1469
      %v1471 = vsel %vm988, %v1424, 0.0
      %v1472 = vadd.f32 %v1470, %v1471
      %v1473 = vsel %vm988, %v1425, 0.0
      %v1474 = vadd.f32 %v1472, %v1473
      %v1475 = vsel %vm988, %v1426, 0.0
      %v1476 = vadd.f32 %v1474, %v1475
      %v1477 = vsel %vm988, %v1427, 0.0
      %v1478 = vadd.f32 %v1476, %v1477
      %v1479 = vsel %vm988, %v1428, 0.0
      %v1480 = vadd.f32 %v1478, %v1479
      %v1481 = vsel %vm988, %v1429, 0.0
      %v1482 = vadd.f32 %v1480, %v1481
      %v1483 = vsel %vm988, %v1430, 0.0
      %v1484 = vadd.f32 %v1482, %v1483
      %v1485 = vsel %vm988, %v1431, 0.0
      %v1486 = vadd.f32 %v1484, %v1485
      %v1487 = vsel %vm988, %v1432, 0.0
      %v1488 = vadd.f32 %v1486, %v1487
      %v1489 = vsel %vm988, %v1433, 0.0
      %v1490 = vadd.f32 %v1488, %v1489
      %v1491 = vsel %vm988, %v1434, 0.0
      %v1492 = vadd.f32 %v1490, %v1491
      %v1493 = vsel %vm988, %v1435, 0.0
      %v1494 = vadd.f32 %v1492, %v1493
      %v1495 = vsel %vm988, %v1436, 0.0
      %v1496 = vadd.f32 %v1494, %v1495
      %v1497 = vsel %vm988, %v1437, 0.0
      %v1498 = vadd.f32 %v1496, %v1497
      %v1499 = vsel %vm988, %v1438, 0.0
      %v1500 = vadd.f32 %v1498, %v1499
      %v1501 = vsel %vm988, %v1439, 0.0
      %v1502 = vadd.f32 %v1500, %v1501
      %v1503 = vrot.slane %v1502, 4
      %v1504 = vadd.f32 %v1502, %v1503
      %v1505 = vrot.slane %v1504, 2
      %v1506 = vadd.f32 %v1504, %v1505
      %v1507 = vrot.slane %v1506, 1
      %v1508 = vadd.f32 %v1506, %v1507
      %v1509 = vmul.f32 %v1508, 0.00390625
      %v1510 = vsub.f32 %v1408, %v1509
      %v1511 = vsub.f32 %v1409, %v1509
      %v1512 = vsub.f32 %v1410, %v1509
      %v1513 = vsub.f32 %v1411, %v1509
      %v1514 = vsub.f32 %v1412, %v1509
      %v1515 = vsub.f32 %v1413, %v1509
      %v1516 = vsub.f32 %v1414, %v1509
      %v1517 = vsub.f32 %v1415, %v1509
      %v1518 = vsub.f32 %v1416, %v1509
      %v1519 = vsub.f32 %v1417, %v1509
      %v1520 = vsub.f32 %v1418, %v1509
      %v1521 = vsub.f32 %v1419, %v1509
      %v1522 = vsub.f32 %v1420, %v1509
      %v1523 = vsub.f32 %v1421, %v1509
      %v1524 = vsub.f32 %v1422, %v1509
      %v1525 = vsub.f32 %v1423, %v1509
      %v1526 = vsub.f32 %v1424, %v1509
      %v1527 = vsub.f32 %v1425, %v1509
      %v1528 = vsub.f32 %v1426, %v1509
      %v1529 = vsub.f32 %v1427, %v1509
      %v1530 = vsub.f32 %v1428, %v1509
      %v1531 = vsub.f32 %v1429, %v1509
      %v1532 = vsub.f32 %v1430, %v1509
      %v1533 = vsub.f32 %v1431, %v1509
      %v1534 = vsub.f32 %v1432, %v1509
      %v1535 = vsub.f32 %v1433, %v1509
      %v1536 = vsub.f32 %v1434, %v1509
      %v1537 = vsub.f32 %v1435, %v1509
      %v1538 = vsub.f32 %v1436, %v1509
      %v1539 = vsub.f32 %v1437, %v1509
      %v1540 = vsub.f32 %v1438, %v1509
      %v1541 = vsub.f32 %v1439, %v1509
      %v1542 = vmul.f32 %v1510, %v1510
      %v1543 = vmul.f32 %v1511, %v1511
      %v1544 = vmul.f32 %v1512, %v1512
      %v1545 = vmul.f32 %v1513, %v1513
      %v1546 = vmul.f32 %v1514, %v1514
      %v1547 = vmul.f32 %v1515, %v1515
      %v1548 = vmul.f32 %v1516, %v1516
      %v1549 = vmul.f32 %v1517, %v1517
      %v1550 = vmul.f32 %v1518, %v1518
      %v1551 = vmul.f32 %v1519, %v1519
      %v1552 = vmul.f32 %v1520, %v1520
      %v1553 = vmul.f32 %v1521, %v1521
      %v1554 = vmul.f32 %v1522, %v1522
      %v1555 = vmul.f32 %v1523, %v1523
      %v1556 = vmul.f32 %v1524, %v1524
      %v1557 = vmul.f32 %v1525, %v1525
      %v1558 = vmul.f32 %v1526, %v1526
      %v1559 = vmul.f32 %v1527, %v1527
      %v1560 = vmul.f32 %v1528, %v1528
      %v1561 = vmul.f32 %v1529, %v1529
      %v1562 = vmul.f32 %v1530, %v1530
      %v1563 = vmul.f32 %v1531, %v1531
      %v1564 = vmul.f32 %v1532, %v1532
      %v1565 = vmul.f32 %v1533, %v1533
      %v1566 = vmul.f32 %v1534, %v1534
      %v1567 = vmul.f32 %v1535, %v1535
      %v1568 = vmul.f32 %v1536, %v1536
      %v1569 = vmul.f32 %v1537, %v1537
      %v1570 = vmul.f32 %v1538, %v1538
      %v1571 = vmul.f32 %v1539, %v1539
      %v1572 = vmul.f32 %v1540, %v1540
      %v1573 = vmul.f32 %v1541, %v1541
      %v1574 = vsel %vm988, %v1542, 0.0
      %v1575 = vsel %vm988, %v1543, 0.0
      %v1576 = vadd.f32 %v1574, %v1575
      %v1577 = vsel %vm988, %v1544, 0.0
      %v1578 = vadd.f32 %v1576, %v1577
      %v1579 = vsel %vm988, %v1545, 0.0
      %v1580 = vadd.f32 %v1578, %v1579
      %v1581 = vsel %vm988, %v1546, 0.0
      %v1582 = vadd.f32 %v1580, %v1581
      %v1583 = vsel %vm988, %v1547, 0.0
      %v1584 = vadd.f32 %v1582, %v1583
      %v1585 = vsel %vm988, %v1548, 0.0
      %v1586 = vadd.f32 %v1584, %v1585
      %v1587 = vsel %vm988, %v1549, 0.0
      %v1588 = vadd.f32 %v1586, %v1587
      %v1589 = vsel %vm988, %v1550, 0.0
      %v1590 = vadd.f32 %v1588, %v1589
      %v1591 = vsel %vm988, %v1551, 0.0
      %v1592 = vadd.f32 %v1590, %v1591
      %v1593 = vsel %vm988, %v1552, 0.0
      %v1594 = vadd.f32 %v1592, %v1593
      %v1595 = vsel %vm988, %v1553, 0.0
      %v1596 = vadd.f32 %v1594, %v1595
      %v1597 = vsel %vm988, %v1554, 0.0
      %v1598 = vadd.f32 %v1596, %v1597
      %v1599 = vsel %vm988, %v1555, 0.0
      %v1600 = vadd.f32 %v1598, %v1599
      %v1601 = vsel %vm988, %v1556, 0.0
      %v1602 = vadd.f32 %v1600, %v1601
      %v1603 = vsel %vm988, %v1557, 0.0
      %v1604 = vadd.f32 %v1602, %v1603
      %v1605 = vsel %vm988, %v1558, 0.0
      %v1606 = vadd.f32 %v1604, %v1605
      %v1607 = vsel %vm988, %v1559, 0.0
      %v1608 = vadd.f32 %v1606, %v1607
      %v1609 = vsel %vm988, %v1560, 0.0
      %v1610 = vadd.f32 %v1608, %v1609
      %v1611 = vsel %vm988, %v1561, 0.0
      %v1612 = vadd.f32 %v1610, %v1611
      %v1613 = vsel %vm988, %v1562, 0.0
      %v1614 = vadd.f32 %v1612, %v1613
      %v1615 = vsel %vm988, %v1563, 0.0
      %v1616 = vadd.f32 %v1614, %v1615
      %v1617 = vsel %vm988, %v1564, 0.0
      %v1618 = vadd.f32 %v1616, %v1617
      %v1619 = vsel %vm988, %v1565, 0.0
      %v1620 = vadd.f32 %v1618, %v1619
      %v1621 = vsel %vm988, %v1566, 0.0
      %v1622 = vadd.f32 %v1620, %v1621
      %v1623 = vsel %vm988, %v1567, 0.0
      %v1624 = vadd.f32 %v1622, %v1623
      %v1625 = vsel %vm988, %v1568, 0.0
      %v1626 = vadd.f32 %v1624, %v1625
      %v1627 = vsel %vm988, %v1569, 0.0
      %v1628 = vadd.f32 %v1626, %v1627
      %v1629 = vsel %vm988, %v1570, 0.0
      %v1630 = vadd.f32 %v1628, %v1629
      %v1631 = vsel %vm988, %v1571, 0.0
      %v1632 = vadd.f32 %v1630, %v1631
      %v1633 = vsel %vm988, %v1572, 0.0
      %v1634 = vadd.f32 %v1632, %v1633
      %v1635 = vsel %vm988, %v1573, 0.0
      %v1636 = vadd.f32 %v1634, %v1635
      %v1637 = vrot.slane %v1636, 4
      %v1638 = vadd.f32 %v1636, %v1637
      %v1639 = vrot.slane %v1638, 2
      %v1640 = vadd.f32 %v1638, %v1639
      %v1641 = vrot.slane %v1640, 1
      %v1642 = vadd.f32 %v1640, %v1641
      %v1643 = vmul.f32 %v1642, 0.00390625
      %v1644 = vadd.f32 %v1643, 1e-05
      %v1645 = vrsqrt.pop %v1644
      %v1646 = vmul.f32 %v1645, %v1644
      %v1647 = vmul.f32 %v1646, %v1645
      %v1648 = vmul.f32 0.5, %v1647
      %v1649 = vsub.f32 1.5, %v1648
      %v1650 = vmul.f32 %v1645, %v1649
      %vm1651 = vweird.f32 %v1644
      %vm1652 = vweird.f32 %v1645
      %vm1653 = vmor %vm1651, %vm1652
      %v1654 = vsel %vm1653, %v1645, %v1650
      %v1655 = vmul.f32 %v1510, %v1654
      %v1656 = vmul.f32 %v1511, %v1654
      %v1657 = vmul.f32 %v1512, %v1654
      %v1658 = vmul.f32 %v1513, %v1654
      %v1659 = vmul.f32 %v1514, %v1654
      %v1660 = vmul.f32 %v1515, %v1654
      %v1661 = vmul.f32 %v1516, %v1654
      %v1662 = vmul.f32 %v1517, %v1654
      %v1663 = vmul.f32 %v1518, %v1654
      %v1664 = vmul.f32 %v1519, %v1654
      %v1665 = vmul.f32 %v1520, %v1654
      %v1666 = vmul.f32 %v1521, %v1654
      %v1667 = vmul.f32 %v1522, %v1654
      %v1668 = vmul.f32 %v1523, %v1654
      %v1669 = vmul.f32 %v1524, %v1654
      %v1670 = vmul.f32 %v1525, %v1654
      %v1671 = vmul.f32 %v1526, %v1654
      %v1672 = vmul.f32 %v1527, %v1654
      %v1673 = vmul.f32 %v1528, %v1654
      %v1674 = vmul.f32 %v1529, %v1654
      %v1675 = vmul.f32 %v1530, %v1654
      %v1676 = vmul.f32 %v1531, %v1654
      %v1677 = vmul.f32 %v1532, %v1654
      %v1678 = vmul.f32 %v1533, %v1654
      %v1679 = vmul.f32 %v1534, %v1654
      %v1680 = vmul.f32 %v1535, %v1654
      %v1681 = vmul.f32 %v1536, %v1654
      %v1682 = vmul.f32 %v1537, %v1654
      %v1683 = vmul.f32 %v1538, %v1654
      %v1684 = vmul.f32 %v1539, %v1654
      %v1685 = vmul.f32 %v1540, %v1654
      %v1686 = vmul.f32 %v1541, %v1654
      %v1687 = vmax.f32 %v1655, 0.0
      %v1688 = vmax.f32 %v1656, 0.0
      %v1689 = vmax.f32 %v1657, 0.0
      %v1690 = vmax.f32 %v1658, 0.0
      %v1691 = vmax.f32 %v1659, 0.0
      %v1692 = vmax.f32 %v1660, 0.0
      %v1693 = vmax.f32 %v1661, 0.0
      %v1694 = vmax.f32 %v1662, 0.0
      %v1695 = vmax.f32 %v1663, 0.0
      %v1696 = vmax.f32 %v1664, 0.0
      %v1697 = vmax.f32 %v1665, 0.0
      %v1698 = vmax.f32 %v1666, 0.0
      %v1699 = vmax.f32 %v1667, 0.0
      %v1700 = vmax.f32 %v1668, 0.0
      %v1701 = vmax.f32 %v1669, 0.0
      %v1702 = vmax.f32 %v1670, 0.0
      %v1703 = vmax.f32 %v1671, 0.0
      %v1704 = vmax.f32 %v1672, 0.0
      %v1705 = vmax.f32 %v1673, 0.0
      %v1706 = vmax.f32 %v1674, 0.0
      %v1707 = vmax.f32 %v1675, 0.0
      %v1708 = vmax.f32 %v1676, 0.0
      %v1709 = vmax.f32 %v1677, 0.0
      %v1710 = vmax.f32 %v1678, 0.0
      %v1711 = vmax.f32 %v1679, 0.0
      %v1712 = vmax.f32 %v1680, 0.0
      %v1713 = vmax.f32 %v1681, 0.0
      %v1714 = vmax.f32 %v1682, 0.0
      %v1715 = vmax.f32 %v1683, 0.0
      %v1716 = vmax.f32 %v1684, 0.0
      %v1717 = vmax.f32 %v1685, 0.0
      %v1718 = vmax.f32 %v1686, 0.0
      %v1719 = vpack.c.bf16 %v1687, %v1687
      %v1720 = vpack.c.bf16 %v1688, %v1688
      %v1721 = vpack.c.bf16 %v1689, %v1689
      %v1722 = vpack.c.bf16 %v1690, %v1690
      %v1723 = vpack.c.bf16 %v1691, %v1691
      %v1724 = vpack.c.bf16 %v1692, %v1692
      %v1725 = vpack.c.bf16 %v1693, %v1693
      %v1726 = vpack.c.bf16 %v1694, %v1694
      %v1727 = vpack.c.bf16 %v1695, %v1695
      %v1728 = vpack.c.bf16 %v1696, %v1696
      %v1729 = vpack.c.bf16 %v1697, %v1697
      %v1730 = vpack.c.bf16 %v1698, %v1698
      %v1731 = vpack.c.bf16 %v1699, %v1699
      %v1732 = vpack.c.bf16 %v1700, %v1700
      %v1733 = vpack.c.bf16 %v1701, %v1701
      %v1734 = vpack.c.bf16 %v1702, %v1702
      %v1735 = vpack.c.bf16 %v1703, %v1703
      %v1736 = vpack.c.bf16 %v1704, %v1704
      %v1737 = vpack.c.bf16 %v1705, %v1705
      %v1738 = vpack.c.bf16 %v1706, %v1706
      %v1739 = vpack.c.bf16 %v1707, %v1707
      %v1740 = vpack.c.bf16 %v1708, %v1708
      %v1741 = vpack.c.bf16 %v1709, %v1709
      %v1742 = vpack.c.bf16 %v1710, %v1710
      %v1743 = vpack.c.bf16 %v1711, %v1711
      %v1744 = vpack.c.bf16 %v1712, %v1712
      %v1745 = vpack.c.bf16 %v1713, %v1713
      %v1746 = vpack.c.bf16 %v1714, %v1714
      %v1747 = vpack.c.bf16 %v1715, %v1715
      %v1748 = vpack.c.bf16 %v1716, %v1716
      %v1749 = vpack.c.bf16 %v1717, %v1717
      %v1750 = vpack.c.bf16 %v1718, %v1718
      %v1767 = vunpack.c.l.b16 %v1719
      %v1768 = vunpack.c.l.b16 %v1721
      %v1769 = vunpack.c.l.b16 %v1723
      %v1770 = vunpack.c.l.b16 %v1725
      %v1771 = vunpack.c.l.b16 %v1727
      %v1772 = vunpack.c.l.b16 %v1729
      %v1773 = vunpack.c.l.b16 %v1731
      %v1774 = vunpack.c.l.b16 %v1733
      %v1775 = vunpack.c.l.b16 %v1735
      %v1776 = vunpack.c.l.b16 %v1737
      %v1777 = vunpack.c.l.b16 %v1739
      %v1778 = vunpack.c.l.b16 %v1741
      %v1779 = vunpack.c.l.b16 %v1743
      %v1780 = vunpack.c.l.b16 %v1745
      %v1781 = vunpack.c.l.b16 %v1747
      %v1782 = vunpack.c.l.b16 %v1749
      %v1783 = vpack.c.b16 %v1767, %v1767
      %v1784 = vpack.c.b16 %v1768, %v1768
      %v1785 = vpack.c.b16 %v1769, %v1769
      %v1786 = vpack.c.b16 %v1770, %v1770
      %v1787 = vpack.c.b16 %v1771, %v1771
      %v1788 = vpack.c.b16 %v1772, %v1772
      %v1789 = vpack.c.b16 %v1773, %v1773
      %v1790 = vpack.c.b16 %v1774, %v1774
      %v1791 = vpack.c.b16 %v1775, %v1775
      %v1792 = vpack.c.b16 %v1776, %v1776
      %v1793 = vpack.c.b16 %v1777, %v1777
      %v1794 = vpack.c.b16 %v1778, %v1778
      %v1795 = vpack.c.b16 %v1779, %v1779
      %v1796 = vpack.c.b16 %v1780, %v1780
      %v1797 = vpack.c.b16 %v1781, %v1781
      %v1798 = vpack.c.b16 %v1782, %v1782
      %v1800 = vshrl.u32 %v1783, 16
      %v1803 = vshrl.u32 %v1784, 16
      %v1806 = vshrl.u32 %v1785, 16
      %v1809 = vshrl.u32 %v1786, 16
      %v1812 = vshrl.u32 %v1787, 16
      %v1815 = vshrl.u32 %v1788, 16
      %v1818 = vshrl.u32 %v1789, 16
      %v1821 = vshrl.u32 %v1790, 16
      %v1824 = vshrl.u32 %v1791, 16
      %v1827 = vshrl.u32 %v1792, 16
      %v1830 = vshrl.u32 %v1793, 16
      %v1833 = vshrl.u32 %v1794, 16
      %v1836 = vshrl.u32 %v1795, 16
      %v1839 = vshrl.u32 %v1796, 16
      %v1842 = vshrl.u32 %v1797, 16
      %v1845 = vshrl.u32 %v1798, 16
      %v1879 = vunpack.c.l.b16 %v1720
      %v1880 = vunpack.c.l.b16 %v1722
      %v1881 = vunpack.c.l.b16 %v1724
      %v1882 = vunpack.c.l.b16 %v1726
      %v1883 = vunpack.c.l.b16 %v1728
      %v1884 = vunpack.c.l.b16 %v1730
      %v1885 = vunpack.c.l.b16 %v1732
      %v1886 = vunpack.c.l.b16 %v1734
      %v1887 = vunpack.c.l.b16 %v1736
      %v1888 = vunpack.c.l.b16 %v1738
      %v1889 = vunpack.c.l.b16 %v1740
      %v1890 = vunpack.c.l.b16 %v1742
      %v1891 = vunpack.c.l.b16 %v1744
      %v1892 = vunpack.c.l.b16 %v1746
      %v1893 = vunpack.c.l.b16 %v1748
      %v1894 = vunpack.c.l.b16 %v1750
      %v1895 = vpack.c.b16 %v1879, %v1767
      %v1896 = vpack.c.b16 %v1880, %v1768
      %v1897 = vpack.c.b16 %v1881, %v1769
      %v1898 = vpack.c.b16 %v1882, %v1770
      %v1899 = vpack.c.b16 %v1883, %v1771
      %v1900 = vpack.c.b16 %v1884, %v1772
      %v1901 = vpack.c.b16 %v1885, %v1773
      %v1902 = vpack.c.b16 %v1886, %v1774
      %v1903 = vpack.c.b16 %v1887, %v1775
      %v1904 = vpack.c.b16 %v1888, %v1776
      %v1905 = vpack.c.b16 %v1889, %v1777
      %v1906 = vpack.c.b16 %v1890, %v1778
      %v1907 = vpack.c.b16 %v1891, %v1779
      %v1908 = vpack.c.b16 %v1892, %v1780
      %v1909 = vpack.c.b16 %v1893, %v1781
      %v1910 = vpack.c.b16 %v1894, %v1782
      %v1912 = vshrl.u32 %v1895, 16
      %v1914 = vrot.slane %v1912, 7
      %v1915 = vshll.u32 %v1895, 16
      %v1917 = vor.u32 %v1914, %v1915
      %v1919 = vshrl.u32 %v1896, 16
      %v1921 = vrot.slane %v1919, 7
      %v1922 = vshll.u32 %v1896, 16
      %v1924 = vor.u32 %v1921, %v1922
      %v1926 = vshrl.u32 %v1897, 16
      %v1928 = vrot.slane %v1926, 7
      %v1929 = vshll.u32 %v1897, 16
      %v1931 = vor.u32 %v1928, %v1929
      %v1933 = vshrl.u32 %v1898, 16
      %v1935 = vrot.slane %v1933, 7
      %v1936 = vshll.u32 %v1898, 16
      %v1938 = vor.u32 %v1935, %v1936
      %v1940 = vshrl.u32 %v1899, 16
      %v1942 = vrot.slane %v1940, 7
      %v1943 = vshll.u32 %v1899, 16
      %v1945 = vor.u32 %v1942, %v1943
      %v1947 = vshrl.u32 %v1900, 16
      %v1949 = vrot.slane %v1947, 7
      %v1950 = vshll.u32 %v1900, 16
      %v1952 = vor.u32 %v1949, %v1950
      %v1954 = vshrl.u32 %v1901, 16
      %v1956 = vrot.slane %v1954, 7
      %v1957 = vshll.u32 %v1901, 16
      %v1959 = vor.u32 %v1956, %v1957
      %v1961 = vshrl.u32 %v1902, 16
      %v1963 = vrot.slane %v1961, 7
      %v1964 = vshll.u32 %v1902, 16
      %v1966 = vor.u32 %v1963, %v1964
      %v1968 = vshrl.u32 %v1903, 16
      %v1970 = vrot.slane %v1968, 7
      %v1971 = vshll.u32 %v1903, 16
      %v1973 = vor.u32 %v1970, %v1971
      %v1975 = vshrl.u32 %v1904, 16
      %v1977 = vrot.slane %v1975, 7
      %v1978 = vshll.u32 %v1904, 16
      %v1980 = vor.u32 %v1977, %v1978
      %v1982 = vshrl.u32 %v1905, 16
      %v1984 = vrot.slane %v1982, 7
      %v1985 = vshll.u32 %v1905, 16
      %v1987 = vor.u32 %v1984, %v1985
      %v1989 = vshrl.u32 %v1906, 16
      %v1991 = vrot.slane %v1989, 7
      %v1992 = vshll.u32 %v1906, 16
      %v1994 = vor.u32 %v1991, %v1992
      %v1996 = vshrl.u32 %v1907, 16
      %v1998 = vrot.slane %v1996, 7
      %v1999 = vshll.u32 %v1907, 16
      %v2001 = vor.u32 %v1998, %v1999
      %v2003 = vshrl.u32 %v1908, 16
      %v2005 = vrot.slane %v2003, 7
      %v2006 = vshll.u32 %v1908, 16
      %v2008 = vor.u32 %v2005, %v2006
      %v2010 = vshrl.u32 %v1909, 16
      %v2012 = vrot.slane %v2010, 7
      %v2013 = vshll.u32 %v1909, 16
      %v2015 = vor.u32 %v2012, %v2013
      %v2017 = vshrl.u32 %v1910, 16
      %v2019 = vrot.slane %v2017, 7
      %v2020 = vshll.u32 %v1910, 16
      %v2022 = vor.u32 %v2019, %v2020
      %v2055 = vpack.c.b16 %v1879, %v1879
      %v2056 = vpack.c.b16 %v1880, %v1880
      %v2057 = vpack.c.b16 %v1881, %v1881
      %v2058 = vpack.c.b16 %v1882, %v1882
      %v2059 = vpack.c.b16 %v1883, %v1883
      %v2060 = vpack.c.b16 %v1884, %v1884
      %v2061 = vpack.c.b16 %v1885, %v1885
      %v2062 = vpack.c.b16 %v1886, %v1886
      %v2063 = vpack.c.b16 %v1887, %v1887
      %v2064 = vpack.c.b16 %v1888, %v1888
      %v2065 = vpack.c.b16 %v1889, %v1889
      %v2066 = vpack.c.b16 %v1890, %v1890
      %v2067 = vpack.c.b16 %v1891, %v1891
      %v2068 = vpack.c.b16 %v1892, %v1892
      %v2069 = vpack.c.b16 %v1893, %v1893
      %v2070 = vpack.c.b16 %v1894, %v1894
      %v2072 = vshll.u32 %v2055, 16
      %v2074 = vrot.slane %v2072, 3
      %v2076 = vshll.u32 %v2056, 16
      %v2078 = vrot.slane %v2076, 3
      %v2080 = vshll.u32 %v2057, 16
      %v2082 = vrot.slane %v2080, 3
      %v2084 = vshll.u32 %v2058, 16
      %v2086 = vrot.slane %v2084, 3
      %v2088 = vshll.u32 %v2059, 16
      %v2090 = vrot.slane %v2088, 3
      %v2092 = vshll.u32 %v2060, 16
      %v2094 = vrot.slane %v2092, 3
      %v2096 = vshll.u32 %v2061, 16
      %v2098 = vrot.slane %v2096, 3
      %v2100 = vshll.u32 %v2062, 16
      %v2102 = vrot.slane %v2100, 3
      %v2104 = vshll.u32 %v2063, 16
      %v2106 = vrot.slane %v2104, 3
      %v2108 = vshll.u32 %v2064, 16
      %v2110 = vrot.slane %v2108, 3
      %v2112 = vshll.u32 %v2065, 16
      %v2114 = vrot.slane %v2112, 3
      %v2116 = vshll.u32 %v2066, 16
      %v2118 = vrot.slane %v2116, 3
      %v2120 = vshll.u32 %v2067, 16
      %v2122 = vrot.slane %v2120, 3
      %v2124 = vshll.u32 %v2068, 16
      %v2126 = vrot.slane %v2124, 3
      %v2128 = vshll.u32 %v2069, 16
      %v2130 = vrot.slane %v2128, 3
      %v2132 = vshll.u32 %v2070, 16
      %v2134 = vrot.slane %v2132, 3
      %v2151 = vsel %vm638, %v1800, %v1917
      %v2152 = vsel %vm638, %v1803, %v1924
      %v2153 = vsel %vm638, %v1806, %v1931
      %v2154 = vsel %vm638, %v1809, %v1938
      %v2155 = vsel %vm638, %v1812, %v1945
      %v2156 = vsel %vm638, %v1815, %v1952
      %v2157 = vsel %vm638, %v1818, %v1959
      %v2158 = vsel %vm638, %v1821, %v1966
      %v2159 = vsel %vm638, %v1824, %v1973
      %v2160 = vsel %vm638, %v1827, %v1980
      %v2161 = vsel %vm638, %v1830, %v1987
      %v2162 = vsel %vm638, %v1833, %v1994
      %v2163 = vsel %vm638, %v1836, %v2001
      %v2164 = vsel %vm638, %v1839, %v2008
      %v2165 = vsel %vm638, %v1842, %v2015
      %v2166 = vsel %vm638, %v1845, %v2022
      %v2167 = vsel %vm638, %v1914, %v2074
      %v2168 = vsel %vm638, %v1921, %v2078
      %v2169 = vsel %vm638, %v1928, %v2082
      %v2170 = vsel %vm638, %v1935, %v2086
      %v2171 = vsel %vm638, %v1942, %v2090
      %v2172 = vsel %vm638, %v1949, %v2094
      %v2173 = vsel %vm638, %v1956, %v2098
      %v2174 = vsel %vm638, %v1963, %v2102
      %v2175 = vsel %vm638, %v1970, %v2106
      %v2176 = vsel %vm638, %v1977, %v2110
      %v2177 = vsel %vm638, %v1984, %v2114
      %v2178 = vsel %vm638, %v1991, %v2118
      %v2179 = vsel %vm638, %v1998, %v2122
      %v2180 = vsel %vm638, %v2005, %v2126
      %v2181 = vsel %vm638, %v2012, %v2130
      %v2182 = vsel %vm638, %v2019, %v2134
      %v2184 = vshrl.u32 %v2152, 16
      %v2186 = vshll.u32 %v2152, 16
      %v2188 = vrot.slane %v2186, 1
      %v2189 = vor.u32 %v2184, %v2188
      %v2191 = vshll.u32 %v2168, 16
      %v2193 = vrot.slane %v2191, 1
      %v2194 = vsel %vm671, %v2189, %v2193
      %v2196 = vshrl.u32 %v2151, 16
      %v2198 = vshll.u32 %v2151, 16
      %v2200 = vrot.slane %v2198, 1
      %v2201 = vor.u32 %v2196, %v2200
      %v2203 = vshll.u32 %v2167, 16
      %v2205 = vrot.slane %v2203, 1
      %v2206 = vsel %vm671, %v2201, %v2205
      %v2208 = vshrl.u32 %v2153, 16
      %v2210 = vshll.u32 %v2153, 16
      %v2212 = vrot.slane %v2210, 1
      %v2213 = vor.u32 %v2208, %v2212
      %v2215 = vshll.u32 %v2169, 16
      %v2217 = vrot.slane %v2215, 1
      %v2218 = vsel %vm671, %v2213, %v2217
      %v2220 = vshrl.u32 %v2154, 16
      %v2222 = vshll.u32 %v2154, 16
      %v2224 = vrot.slane %v2222, 1
      %v2225 = vor.u32 %v2220, %v2224
      %v2227 = vshll.u32 %v2170, 16
      %v2229 = vrot.slane %v2227, 1
      %v2230 = vsel %vm671, %v2225, %v2229
      %v2232 = vshrl.u32 %v2155, 16
      %v2234 = vshll.u32 %v2155, 16
      %v2236 = vrot.slane %v2234, 1
      %v2237 = vor.u32 %v2232, %v2236
      %v2239 = vshll.u32 %v2171, 16
      %v2241 = vrot.slane %v2239, 1
      %v2242 = vsel %vm671, %v2237, %v2241
      %v2244 = vshrl.u32 %v2156, 16
      %v2246 = vshll.u32 %v2156, 16
      %v2248 = vrot.slane %v2246, 1
      %v2249 = vor.u32 %v2244, %v2248
      %v2251 = vshll.u32 %v2172, 16
      %v2253 = vrot.slane %v2251, 1
      %v2254 = vsel %vm671, %v2249, %v2253
      %v2256 = vshrl.u32 %v2157, 16
      %v2258 = vshll.u32 %v2157, 16
      %v2260 = vrot.slane %v2258, 1
      %v2261 = vor.u32 %v2256, %v2260
      %v2263 = vshll.u32 %v2173, 16
      %v2265 = vrot.slane %v2263, 1
      %v2266 = vsel %vm671, %v2261, %v2265
      %v2268 = vshrl.u32 %v2158, 16
      %v2270 = vshll.u32 %v2158, 16
      %v2272 = vrot.slane %v2270, 1
      %v2273 = vor.u32 %v2268, %v2272
      %v2275 = vshll.u32 %v2174, 16
      %v2277 = vrot.slane %v2275, 1
      %v2278 = vsel %vm671, %v2273, %v2277
      %v2280 = vshrl.u32 %v2159, 16
      %v2282 = vshll.u32 %v2159, 16
      %v2284 = vrot.slane %v2282, 1
      %v2285 = vor.u32 %v2280, %v2284
      %v2287 = vshll.u32 %v2175, 16
      %v2289 = vrot.slane %v2287, 1
      %v2290 = vsel %vm671, %v2285, %v2289
      %v2292 = vshrl.u32 %v2160, 16
      %v2294 = vshll.u32 %v2160, 16
      %v2296 = vrot.slane %v2294, 1
      %v2297 = vor.u32 %v2292, %v2296
      %v2299 = vshll.u32 %v2176, 16
      %v2301 = vrot.slane %v2299, 1
      %v2302 = vsel %vm671, %v2297, %v2301
      %v2304 = vshrl.u32 %v2161, 16
      %v2306 = vshll.u32 %v2161, 16
      %v2308 = vrot.slane %v2306, 1
      %v2309 = vor.u32 %v2304, %v2308
      %v2311 = vshll.u32 %v2177, 16
      %v2313 = vrot.slane %v2311, 1
      %v2314 = vsel %vm671, %v2309, %v2313
      %v2316 = vshrl.u32 %v2162, 16
      %v2318 = vshll.u32 %v2162, 16
      %v2320 = vrot.slane %v2318, 1
      %v2321 = vor.u32 %v2316, %v2320
      %v2323 = vshll.u32 %v2178, 16
      %v2325 = vrot.slane %v2323, 1
      %v2326 = vsel %vm671, %v2321, %v2325
      %v2328 = vshrl.u32 %v2163, 16
      %v2330 = vshll.u32 %v2163, 16
      %v2332 = vrot.slane %v2330, 1
      %v2333 = vor.u32 %v2328, %v2332
      %v2335 = vshll.u32 %v2179, 16
      %v2337 = vrot.slane %v2335, 1
      %v2338 = vsel %vm671, %v2333, %v2337
      %v2340 = vshrl.u32 %v2164, 16
      %v2342 = vshll.u32 %v2164, 16
      %v2344 = vrot.slane %v2342, 1
      %v2345 = vor.u32 %v2340, %v2344
      %v2347 = vshll.u32 %v2180, 16
      %v2349 = vrot.slane %v2347, 1
      %v2350 = vsel %vm671, %v2345, %v2349
      %v2352 = vshrl.u32 %v2165, 16
      %v2354 = vshll.u32 %v2165, 16
      %v2356 = vrot.slane %v2354, 1
      %v2357 = vor.u32 %v2352, %v2356
      %v2359 = vshll.u32 %v2181, 16
      %v2361 = vrot.slane %v2359, 1
      %v2362 = vsel %vm671, %v2357, %v2361
      %2363 = vrot.lane.b32.xlu0 %v2194, 4
      %v2364 = vpop.permute.xlu0 %2363
      %2365 = vrot.lane.b32.xlu0 %v2206, 4
      %v2366 = vpop.permute.xlu0 %2365
      %2367 = vrot.lane.b32.xlu0 %v2218, 4
      %v2368 = vpop.permute.xlu0 %2367
      %2369 = vrot.lane.b32.xlu0 %v2230, 4
      %v2370 = vpop.permute.xlu0 %2369
      %2371 = vrot.lane.b32.xlu0 %v2242, 4
      %v2372 = vpop.permute.xlu0 %2371
      %2373 = vrot.lane.b32.xlu0 %v2254, 4
      %v2374 = vpop.permute.xlu0 %2373
      %2375 = vrot.lane.b32.xlu0 %v2266, 4
      %v2376 = vpop.permute.xlu0 %2375
      %2377 = vrot.lane.b32.xlu0 %v2278, 4
      %v2378 = vpop.permute.xlu0 %2377
      %2379 = vrot.lane.b32.xlu0 %v2290, 4
      %v2380 = vpop.permute.xlu0 %2379
      %2381 = vrot.lane.b32.xlu0 %v2302, 4
      %v2382 = vpop.permute.xlu0 %2381
      %2383 = vrot.lane.b32.xlu0 %v2314, 4
      %v2384 = vpop.permute.xlu0 %2383
      %2385 = vrot.lane.b32.xlu0 %v2326, 4
      %v2386 = vpop.permute.xlu0 %2385
      %2387 = vrot.lane.b32.xlu0 %v2338, 4
      %v2388 = vpop.permute.xlu0 %2387
      %2389 = vrot.lane.b32.xlu0 %v2350, 4
      %v2390 = vpop.permute.xlu0 %2389
      %2391 = vrot.lane.b32.xlu0 %v2362, 4
      %v2392 = vpop.permute.xlu0 %2391
      %v2423 = vrot.slane %v2152, 1
      %v2424 = vrot.slane %v2168, 1
      %v2425 = vsel %vm912, %v2423, %v2424
      %v2426 = vrot.slane %v2151, 1
      %v2427 = vrot.slane %v2167, 1
      %v2428 = vsel %vm912, %v2426, %v2427
      %v2429 = vrot.slane %v2153, 1
      %v2430 = vrot.slane %v2169, 1
      %v2431 = vsel %vm912, %v2429, %v2430
      %v2432 = vrot.slane %v2154, 1
      %v2433 = vrot.slane %v2170, 1
      %v2434 = vsel %vm912, %v2432, %v2433
      %v2435 = vrot.slane %v2155, 1
      %v2436 = vrot.slane %v2171, 1
      %v2437 = vsel %vm912, %v2435, %v2436
      %v2438 = vrot.slane %v2156, 1
      %v2439 = vrot.slane %v2172, 1
      %v2440 = vsel %vm912, %v2438, %v2439
      %v2441 = vrot.slane %v2157, 1
      %v2442 = vrot.slane %v2173, 1
      %v2443 = vsel %vm912, %v2441, %v2442
      %v2444 = vrot.slane %v2158, 1
      %v2445 = vrot.slane %v2174, 1
      %v2446 = vsel %vm912, %v2444, %v2445
      %v2447 = vrot.slane %v2159, 1
      %v2448 = vrot.slane %v2175, 1
      %v2449 = vsel %vm912, %v2447, %v2448
      %v2450 = vrot.slane %v2160, 1
      %v2451 = vrot.slane %v2176, 1
      %v2452 = vsel %vm912, %v2450, %v2451
      %v2453 = vrot.slane %v2161, 1
      %v2454 = vrot.slane %v2177, 1
      %v2455 = vsel %vm912, %v2453, %v2454
      %v2456 = vrot.slane %v2162, 1
      %v2457 = vrot.slane %v2178, 1
      %v2458 = vsel %vm912, %v2456, %v2457
      %v2459 = vrot.slane %v2163, 1
      %v2460 = vrot.slane %v2179, 1
      %v2461 = vsel %vm912, %v2459, %v2460
      %v2462 = vrot.slane %v2164, 1
      %v2463 = vrot.slane %v2180, 1
      %v2464 = vsel %vm912, %v2462, %v2463
      %v2465 = vrot.slane %v2165, 1
      %v2466 = vrot.slane %v2181, 1
      %v2467 = vsel %vm912, %v2465, %v2466
      %2468 = vrot.lane.b32.xlu0 %v2425, 8
      %v2469 = vpop.permute.xlu0 %2468
      %2470 = vrot.lane.b32.xlu0 %v2428, 8
      %v2471 = vpop.permute.xlu0 %2470
      %2472 = vrot.lane.b32.xlu0 %v2431, 8
      %v2473 = vpop.permute.xlu0 %2472
      %2474 = vrot.lane.b32.xlu0 %v2434, 8
      %v2475 = vpop.permute.xlu0 %2474
      %2476 = vrot.lane.b32.xlu0 %v2437, 8
      %v2477 = vpop.permute.xlu0 %2476
      %2478 = vrot.lane.b32.xlu0 %v2440, 8
      %v2479 = vpop.permute.xlu0 %2478
      %2480 = vrot.lane.b32.xlu0 %v2443, 8
      %v2481 = vpop.permute.xlu0 %2480
      %2482 = vrot.lane.b32.xlu0 %v2446, 8
      %v2483 = vpop.permute.xlu0 %2482
      %2484 = vrot.lane.b32.xlu0 %v2449, 8
      %v2485 = vpop.permute.xlu0 %2484
      %2486 = vrot.lane.b32.xlu0 %v2452, 8
      %v2487 = vpop.permute.xlu0 %2486
      %2488 = vrot.lane.b32.xlu0 %v2455, 8
      %v2489 = vpop.permute.xlu0 %2488
      %2490 = vrot.lane.b32.xlu0 %v2458, 8
      %v2491 = vpop.permute.xlu0 %2490
      %2492 = vrot.lane.b32.xlu0 %v2461, 8
      %v2493 = vpop.permute.xlu0 %2492
      %2494 = vrot.lane.b32.xlu0 %v2464, 8
      %v2495 = vpop.permute.xlu0 %2494
      %2496 = vrot.lane.b32.xlu0 %v2467, 8
      %v2497 = vpop.permute.xlu0 %2496
      %v2499 = vsel %vm988, %v2152, %v2364
      %v2501 = vsel %vm988, %v2151, %v2366
      %v2503 = vsel %vm988, %v2153, %v2368
      %v2505 = vsel %vm988, %v2154, %v2370
      %v2507 = vsel %vm988, %v2155, %v2372
      %v2509 = vsel %vm988, %v2156, %v2374
      %v2511 = vsel %vm988, %v2157, %v2376
      %v2513 = vsel %vm988, %v2158, %v2378
      %v2515 = vsel %vm988, %v2159, %v2380
      %v2517 = vsel %vm988, %v2160, %v2382
      %v2519 = vsel %vm988, %v2161, %v2384
      %v2521 = vsel %vm988, %v2162, %v2386
      %v2523 = vsel %vm988, %v2163, %v2388
      %v2525 = vsel %vm988, %v2164, %v2390
      %v2527 = vsel %vm988, %v2165, %v2392
      %v2529 = vsel %vm1019, %v2499, %v2469
      %v2531 = vsel %vm1019, %v2501, %v2471
      %v2533 = vsel %vm1019, %v2503, %v2473
      %v2535 = vsel %vm1019, %v2505, %v2475
      %v2537 = vsel %vm1019, %v2507, %v2477
      %v2539 = vsel %vm1019, %v2509, %v2479
      %v2541 = vsel %vm1019, %v2511, %v2481
      %v2543 = vsel %vm1019, %v2513, %v2483
      %v2545 = vsel %vm1019, %v2515, %v2485
      %v2547 = vsel %vm1019, %v2517, %v2487
      %v2549 = vsel %vm1019, %v2519, %v2489
      %v2551 = vsel %vm1019, %v2521, %v2491
      %v2553 = vsel %vm1019, %v2523, %v2493
      %v2555 = vsel %vm1019, %v2525, %v2495
      %v2557 = vsel %vm1019, %v2527, %v2497
      %v2558 = vld [vmem:[%s2] sm:$0xf]
      %v2559 = vld [vmem:[%s2 + $0x4] sm:$0x3]
      %v2561 = vshrl.u32 %v2166, 16
      %v2563 = vshll.u32 %v2166, 16
      %v2565 = vrot.slane %v2563, 1
      %v2566 = vor.u32 %v2561, %v2565
      %v2568 = vshll.u32 %v2182, 16
      %v2570 = vrot.slane %v2568, 1
      %v2571 = vsel %vm671, %v2566, %v2570
      %2572 = vrot.lane.b32.xlu0 %v2571, 4
      %v2573 = vpop.permute.xlu0 %2572
      %v2576 = vrot.slane %v2166, 1
      %v2577 = vrot.slane %v2182, 1
      %v2578 = vsel %vm912, %v2576, %v2577
      %2579 = vrot.lane.b32.xlu0 %v2578, 8
      %v2580 = vpop.permute.xlu0 %2579
      %v2582 = vsel %vm988, %v2166, %v2573
      %v2584 = vsel %vm1019, %v2582, %v2580
      %s2585 = scalar_lea.vmem %s2, 8
      %v2586 = vld [vmem:[%s2585] sm:$0xf]
      %v2587 = vld [vmem:[%s2585 + $0x4] sm:$0x3]
      %v2590 = vunpack.c.l.b16 %v2586
      %v2591 = vunpack.c.l.b16 %v2587
      %v2592 = vpack.c.b16 %v2591, %v2590
      %v2593 = vsel %vm1085, %v2531, 0
      %v2595 = vsel %vm1085, %v2529, 0
      %v2597 = vsel %vm1085, %v2533, 0
      %v2599 = vsel %vm1085, %v2535, 0
      %v2601 = vsel %vm1085, %v2537, 0
      %v2603 = vsel %vm1085, %v2539, 0
      %v2605 = vsel %vm1085, %v2541, 0
      %v2607 = vsel %vm1085, %v2543, 0
      %v2609 = vsel %vm1085, %v2545, 0
      %v2611 = vsel %vm1085, %v2547, 0
      %v2613 = vsel %vm1085, %v2549, 0
      %v2615 = vsel %vm1085, %v2551, 0
      %v2617 = vsel %vm1085, %v2553, 0
      %v2619 = vsel %vm1085, %v2555, 0
      %v2621 = vsel %vm1085, %v2557, 0
      %v2623 = vsel %vm1085, %v2584, 0
      %v2626 = vsel %vm1118, %v2592, 0
      %2628 = vmatpush.bf16.msra.mxu0 0
      %2629 = vmatpush.bf16.msra.mxu0 0
      %2630 = vmatpush.bf16.msra.mxu0 0
      %2631 = vmatpush.bf16.msra.mxu0 0
      %2632 = vmatpush.bf16.msra.mxu0 0
      %2633 = vmatpush.bf16.msra.mxu0 0
      %2634 = vmatpush.bf16.msra.mxu0 0
      %2635 = vmatpush.bf16.msra.mxu0 %v2626
      %2636 = vmatmul.bf16.gmra.mxu0 %v2593
      %v2637 = vpop.f32.mrf.mxu0
      %v2638 = vadd.f32 0.0, %v2637
      %v2639 = vpop.f32.mrf.mxu0
      %v2640 = vadd.f32 0.0, %v2639
      %2641 = vmatmul.bf16.gmra.mxu0 %v2595
      %v2642 = vpop.f32.mrf.mxu0
      %v2643 = vadd.f32 0.0, %v2642
      %v2644 = vpop.f32.mrf.mxu0
      %v2645 = vadd.f32 0.0, %v2644
      %2646 = vmatmul.bf16.gmra.mxu0 %v2597
      %v2647 = vpop.f32.mrf.mxu0
      %v2648 = vadd.f32 0.0, %v2647
      %v2649 = vpop.f32.mrf.mxu0
      %v2650 = vadd.f32 0.0, %v2649
      %2651 = vmatmul.bf16.gmra.mxu0 %v2599
      %v2652 = vpop.f32.mrf.mxu0
      %v2653 = vadd.f32 0.0, %v2652
      %v2654 = vpop.f32.mrf.mxu0
      %v2655 = vadd.f32 0.0, %v2654
      %2656 = vmatmul.bf16.gmra.mxu0 %v2601
      %v2657 = vpop.f32.mrf.mxu0
      %v2658 = vadd.f32 0.0, %v2657
      %v2659 = vpop.f32.mrf.mxu0
      %v2660 = vadd.f32 0.0, %v2659
      %2661 = vmatmul.bf16.gmra.mxu0 %v2603
      %v2662 = vpop.f32.mrf.mxu0
      %v2663 = vadd.f32 0.0, %v2662
      %v2664 = vpop.f32.mrf.mxu0
      %v2665 = vadd.f32 0.0, %v2664
      %2666 = vmatmul.bf16.gmra.mxu0 %v2605
      %v2667 = vpop.f32.mrf.mxu0
      %v2668 = vadd.f32 0.0, %v2667
      %v2669 = vpop.f32.mrf.mxu0
      %v2670 = vadd.f32 0.0, %v2669
      %2671 = vmatmul.bf16.gmra.mxu0 %v2607
      %v2672 = vpop.f32.mrf.mxu0
      %v2673 = vadd.f32 0.0, %v2672
      %v2674 = vpop.f32.mrf.mxu0
      %v2675 = vadd.f32 0.0, %v2674
      %2676 = vmatmul.bf16.gmra.mxu0 %v2609
      %v2677 = vpop.f32.mrf.mxu0
      %v2678 = vadd.f32 0.0, %v2677
      %v2679 = vpop.f32.mrf.mxu0
      %v2680 = vadd.f32 0.0, %v2679
      %2681 = vmatmul.bf16.gmra.mxu0 %v2611
      %v2682 = vpop.f32.mrf.mxu0
      %v2683 = vadd.f32 0.0, %v2682
      %v2684 = vpop.f32.mrf.mxu0
      %v2685 = vadd.f32 0.0, %v2684
      %2686 = vmatmul.bf16.gmra.mxu0 %v2613
      %v2687 = vpop.f32.mrf.mxu0
      %v2688 = vadd.f32 0.0, %v2687
      %v2689 = vpop.f32.mrf.mxu0
      %v2690 = vadd.f32 0.0, %v2689
      %2691 = vmatmul.bf16.gmra.mxu0 %v2615
      %v2692 = vpop.f32.mrf.mxu0
      %v2693 = vadd.f32 0.0, %v2692
      %v2694 = vpop.f32.mrf.mxu0
      %v2695 = vadd.f32 0.0, %v2694
      %2696 = vmatmul.bf16.gmra.mxu0 %v2617
      %v2697 = vpop.f32.mrf.mxu0
      %v2698 = vadd.f32 0.0, %v2697
      %v2699 = vpop.f32.mrf.mxu0
      %v2700 = vadd.f32 0.0, %v2699
      %2701 = vmatmul.bf16.gmra.mxu0 %v2619
      %v2702 = vpop.f32.mrf.mxu0
      %v2703 = vadd.f32 0.0, %v2702
      %v2704 = vpop.f32.mrf.mxu0
      %v2705 = vadd.f32 0.0, %v2704
      %2706 = vmatmul.bf16.gmra.mxu0 %v2621
      %v2707 = vpop.f32.mrf.mxu0
      %v2708 = vadd.f32 0.0, %v2707
      %v2709 = vpop.f32.mrf.mxu0
      %v2710 = vadd.f32 0.0, %v2709
      %2711 = vmatmul.bf16.gmra.mxu0 %v2623
      %v2712 = vpop.f32.mrf.mxu0
      %v2713 = vadd.f32 0.0, %v2712
      %v2714 = vpop.f32.mrf.mxu0
      %v2715 = vadd.f32 0.0, %v2714
      %2716 = vdwg.mxu0
      %v2719 = vunpack.c.l.b16 %v2558
      %v2720 = vunpack.c.l.b16 %v2559
      %v2721 = vpack.c.b16 %v2720, %v2719
      %v2723 = vsel %vm1118, %v2721, 0
      %2725 = vmatpush.bf16.msra.mxu0 0
      %2726 = vmatpush.bf16.msra.mxu0 0
      %2727 = vmatpush.bf16.msra.mxu0 0
      %2728 = vmatpush.bf16.msra.mxu0 0
      %2729 = vmatpush.bf16.msra.mxu0 0
      %2730 = vmatpush.bf16.msra.mxu0 0
      %2731 = vmatpush.bf16.msra.mxu0 0
      %2732 = vmatpush.bf16.msra.mxu0 %v2723
      %2733 = vmatmul.bf16.gmra.mxu0 %v2595
      %v2734 = vpop.f32.mrf.mxu0
      %v2735 = vadd.f32 %v2638, %v2734
      %v2736 = vpop.f32.mrf.mxu0
      %v2737 = vadd.f32 %v2640, %v2736
      %2738 = vmatmul.bf16.gmra.mxu0 %v2593
      %v2739 = vpop.f32.mrf.mxu0
      %v2740 = vadd.f32 %v2643, %v2739
      %v2741 = vpop.f32.mrf.mxu0
      %v2742 = vadd.f32 %v2645, %v2741
      %2743 = vmatmul.bf16.gmra.mxu0 %v2595
      %v2744 = vpop.f32.mrf.mxu0
      %v2745 = vadd.f32 %v2648, %v2744
      %v2746 = vpop.f32.mrf.mxu0
      %v2747 = vadd.f32 %v2650, %v2746
      %2748 = vmatmul.bf16.gmra.mxu0 %v2597
      %v2749 = vpop.f32.mrf.mxu0
      %v2750 = vadd.f32 %v2653, %v2749
      %v2751 = vpop.f32.mrf.mxu0
      %v2752 = vadd.f32 %v2655, %v2751
      %2753 = vmatmul.bf16.gmra.mxu0 %v2599
      %v2754 = vpop.f32.mrf.mxu0
      %v2755 = vadd.f32 %v2658, %v2754
      %v2756 = vpop.f32.mrf.mxu0
      %v2757 = vadd.f32 %v2660, %v2756
      %2758 = vmatmul.bf16.gmra.mxu0 %v2601
      %v2759 = vpop.f32.mrf.mxu0
      %v2760 = vadd.f32 %v2663, %v2759
      %v2761 = vpop.f32.mrf.mxu0
      %v2762 = vadd.f32 %v2665, %v2761
      %2763 = vmatmul.bf16.gmra.mxu0 %v2603
      %v2764 = vpop.f32.mrf.mxu0
      %v2765 = vadd.f32 %v2668, %v2764
      %v2766 = vpop.f32.mrf.mxu0
      %v2767 = vadd.f32 %v2670, %v2766
      %2768 = vmatmul.bf16.gmra.mxu0 %v2605
      %v2769 = vpop.f32.mrf.mxu0
      %v2770 = vadd.f32 %v2673, %v2769
      %v2771 = vpop.f32.mrf.mxu0
      %v2772 = vadd.f32 %v2675, %v2771
      %2773 = vmatmul.bf16.gmra.mxu0 %v2607
      %v2774 = vpop.f32.mrf.mxu0
      %v2775 = vadd.f32 %v2678, %v2774
      %v2776 = vpop.f32.mrf.mxu0
      %v2777 = vadd.f32 %v2680, %v2776
      %2778 = vmatmul.bf16.gmra.mxu0 %v2609
      %v2779 = vpop.f32.mrf.mxu0
      %v2780 = vadd.f32 %v2683, %v2779
      %v2781 = vpop.f32.mrf.mxu0
      %v2782 = vadd.f32 %v2685, %v2781
      %2783 = vmatmul.bf16.gmra.mxu0 %v2611
      %v2784 = vpop.f32.mrf.mxu0
      %v2785 = vadd.f32 %v2688, %v2784
      %v2786 = vpop.f32.mrf.mxu0
      %v2787 = vadd.f32 %v2690, %v2786
      %2788 = vmatmul.bf16.gmra.mxu0 %v2613
      %v2789 = vpop.f32.mrf.mxu0
      %v2790 = vadd.f32 %v2693, %v2789
      %v2791 = vpop.f32.mrf.mxu0
      %v2792 = vadd.f32 %v2695, %v2791
      %2793 = vmatmul.bf16.gmra.mxu0 %v2615
      %v2794 = vpop.f32.mrf.mxu0
      %v2795 = vadd.f32 %v2698, %v2794
      %v2796 = vpop.f32.mrf.mxu0
      %v2797 = vadd.f32 %v2700, %v2796
      %2798 = vmatmul.bf16.gmra.mxu0 %v2617
      %v2799 = vpop.f32.mrf.mxu0
      %v2800 = vadd.f32 %v2703, %v2799
      %v2801 = vpop.f32.mrf.mxu0
      %v2802 = vadd.f32 %v2705, %v2801
      %2803 = vmatmul.bf16.gmra.mxu0 %v2619
      %v2804 = vpop.f32.mrf.mxu0
      %v2805 = vadd.f32 %v2708, %v2804
      %v2806 = vpop.f32.mrf.mxu0
      %v2807 = vadd.f32 %v2710, %v2806
      %2808 = vmatmul.bf16.gmra.mxu0 %v2621
      %v2809 = vpop.f32.mrf.mxu0
      %v2810 = vadd.f32 %v2713, %v2809
      %v2811 = vpop.f32.mrf.mxu0
      %v2812 = vadd.f32 %v2715, %v2811
      %2813 = vdwg.mxu0
      %s2814 = scalar_lea.vmem %s2, 16
      %v2815 = vld [vmem:[%s2814] sm:$0xf]
      %v2816 = vld [vmem:[%s2814 + $0x4] sm:$0x3]
      %v2819 = vunpack.c.l.b16 %v2815
      %v2820 = vunpack.c.l.b16 %v2816
      %v2821 = vpack.c.b16 %v2820, %v2819
      %v2823 = vsel %vm1118, %v2821, 0
      %2825 = vmatpush.bf16.msra.mxu0 0
      %2826 = vmatpush.bf16.msra.mxu0 0
      %2827 = vmatpush.bf16.msra.mxu0 0
      %2828 = vmatpush.bf16.msra.mxu0 0
      %2829 = vmatpush.bf16.msra.mxu0 0
      %2830 = vmatpush.bf16.msra.mxu0 0
      %2831 = vmatpush.bf16.msra.mxu0 0
      %2832 = vmatpush.bf16.msra.mxu0 %v2823
      %2833 = vmatmul.bf16.gmra.mxu0 %v2595
      %v2834 = vpop.f32.mrf.mxu0
      %v2835 = vadd.f32 0.0, %v2834
      %v2836 = vpop.f32.mrf.mxu0
      %v2837 = vadd.f32 0.0, %v2836
      %2838 = vmatmul.bf16.gmra.mxu0 %v2597
      %v2839 = vpop.f32.mrf.mxu0
      %v2840 = vadd.f32 0.0, %v2839
      %v2841 = vpop.f32.mrf.mxu0
      %v2842 = vadd.f32 0.0, %v2841
      %2843 = vmatmul.bf16.gmra.mxu0 %v2599
      %v2844 = vpop.f32.mrf.mxu0
      %v2845 = vadd.f32 0.0, %v2844
      %v2846 = vpop.f32.mrf.mxu0
      %v2847 = vadd.f32 0.0, %v2846
      %2848 = vmatmul.bf16.gmra.mxu0 %v2601
      %v2849 = vpop.f32.mrf.mxu0
      %v2850 = vadd.f32 0.0, %v2849
      %v2851 = vpop.f32.mrf.mxu0
      %v2852 = vadd.f32 0.0, %v2851
      %2853 = vmatmul.bf16.gmra.mxu0 %v2603
      %v2854 = vpop.f32.mrf.mxu0
      %v2855 = vadd.f32 0.0, %v2854
      %v2856 = vpop.f32.mrf.mxu0
      %v2857 = vadd.f32 0.0, %v2856
      %2858 = vmatmul.bf16.gmra.mxu0 %v2605
      %v2859 = vpop.f32.mrf.mxu0
      %v2860 = vadd.f32 0.0, %v2859
      %v2861 = vpop.f32.mrf.mxu0
      %v2862 = vadd.f32 0.0, %v2861
      %2863 = vmatmul.bf16.gmra.mxu0 %v2607
      %v2864 = vpop.f32.mrf.mxu0
      %v2865 = vadd.f32 0.0, %v2864
      %v2866 = vpop.f32.mrf.mxu0
      %v2867 = vadd.f32 0.0, %v2866
      %2868 = vmatmul.bf16.gmra.mxu0 %v2609
      %v2869 = vpop.f32.mrf.mxu0
      %v2870 = vadd.f32 0.0, %v2869
      %v2871 = vpop.f32.mrf.mxu0
      %v2872 = vadd.f32 0.0, %v2871
      %2873 = vmatmul.bf16.gmra.mxu0 %v2611
      %v2874 = vpop.f32.mrf.mxu0
      %v2875 = vadd.f32 0.0, %v2874
      %v2876 = vpop.f32.mrf.mxu0
      %v2877 = vadd.f32 0.0, %v2876
      %2878 = vmatmul.bf16.gmra.mxu0 %v2613
      %v2879 = vpop.f32.mrf.mxu0
      %v2880 = vadd.f32 0.0, %v2879
      %v2881 = vpop.f32.mrf.mxu0
      %v2882 = vadd.f32 0.0, %v2881
      %2883 = vmatmul.bf16.gmra.mxu0 %v2615
      %v2884 = vpop.f32.mrf.mxu0
      %v2885 = vadd.f32 0.0, %v2884
      %v2886 = vpop.f32.mrf.mxu0
      %v2887 = vadd.f32 0.0, %v2886
      %2888 = vmatmul.bf16.gmra.mxu0 %v2617
      %v2889 = vpop.f32.mrf.mxu0
      %v2890 = vadd.f32 0.0, %v2889
      %v2891 = vpop.f32.mrf.mxu0
      %v2892 = vadd.f32 0.0, %v2891
      %2893 = vmatmul.bf16.gmra.mxu0 %v2619
      %v2894 = vpop.f32.mrf.mxu0
      %v2895 = vadd.f32 0.0, %v2894
      %v2896 = vpop.f32.mrf.mxu0
      %v2897 = vadd.f32 0.0, %v2896
      %2898 = vmatmul.bf16.gmra.mxu0 %v2621
      %v2899 = vpop.f32.mrf.mxu0
      %v2900 = vadd.f32 0.0, %v2899
      %v2901 = vpop.f32.mrf.mxu0
      %v2902 = vadd.f32 0.0, %v2901
      %2903 = vmatmul.bf16.gmra.mxu0 %v2623
      %v2904 = vpop.f32.mrf.mxu0
      %v2905 = vadd.f32 0.0, %v2904
      %v2906 = vpop.f32.mrf.mxu0
      %v2907 = vadd.f32 0.0, %v2906
      %2908 = vmatmul.bf16.gmra.mxu0 %v2621
      %v2909 = vpop.f32.mrf.mxu0
      %v2910 = vadd.f32 0.0, %v2909
      %v2911 = vpop.f32.mrf.mxu0
      %v2912 = vadd.f32 0.0, %v2911
      %2913 = vdwg.mxu0
      %v2914 = vadd.f32 %v2735, %v2835
      %v2915 = vadd.f32 %v2737, %v2837
      %v2916 = vadd.f32 %v2740, %v2840
      %v2917 = vadd.f32 %v2742, %v2842
      %v2918 = vadd.f32 %v2745, %v2845
      %v2919 = vadd.f32 %v2747, %v2847
      %v2920 = vadd.f32 %v2750, %v2850
      %v2921 = vadd.f32 %v2752, %v2852
      %v2922 = vadd.f32 %v2755, %v2855
      %v2923 = vadd.f32 %v2757, %v2857
      %v2924 = vadd.f32 %v2760, %v2860
      %v2925 = vadd.f32 %v2762, %v2862
      %v2926 = vadd.f32 %v2765, %v2865
      %v2927 = vadd.f32 %v2767, %v2867
      %v2928 = vadd.f32 %v2770, %v2870
      %v2929 = vadd.f32 %v2772, %v2872
      %v2930 = vadd.f32 %v2775, %v2875
      %v2931 = vadd.f32 %v2777, %v2877
      %v2932 = vadd.f32 %v2780, %v2880
      %v2933 = vadd.f32 %v2782, %v2882
      %v2934 = vadd.f32 %v2785, %v2885
      %v2935 = vadd.f32 %v2787, %v2887
      %v2936 = vadd.f32 %v2790, %v2890
      %v2937 = vadd.f32 %v2792, %v2892
      %v2938 = vadd.f32 %v2795, %v2895
      %v2939 = vadd.f32 %v2797, %v2897
      %v2940 = vadd.f32 %v2800, %v2900
      %v2941 = vadd.f32 %v2802, %v2902
      %v2942 = vadd.f32 %v2805, %v2905
      %v2943 = vadd.f32 %v2807, %v2907
      %v2944 = vadd.f32 %v2810, %v2910
      %v2945 = vadd.f32 %v2812, %v2912
      %v2946 = vsel %vm988, %v2914, 0.0
      %v2947 = vsel %vm988, %v2915, 0.0
      %v2948 = vadd.f32 %v2946, %v2947
      %v2949 = vsel %vm988, %v2916, 0.0
      %v2950 = vadd.f32 %v2948, %v2949
      %v2951 = vsel %vm988, %v2917, 0.0
      %v2952 = vadd.f32 %v2950, %v2951
      %v2953 = vsel %vm988, %v2918, 0.0
      %v2954 = vadd.f32 %v2952, %v2953
      %v2955 = vsel %vm988, %v2919, 0.0
      %v2956 = vadd.f32 %v2954, %v2955
      %v2957 = vsel %vm988, %v2920, 0.0
      %v2958 = vadd.f32 %v2956, %v2957
      %v2959 = vsel %vm988, %v2921, 0.0
      %v2960 = vadd.f32 %v2958, %v2959
      %v2961 = vsel %vm988, %v2922, 0.0
      %v2962 = vadd.f32 %v2960, %v2961
      %v2963 = vsel %vm988, %v2923, 0.0
      %v2964 = vadd.f32 %v2962, %v2963
      %v2965 = vsel %vm988, %v2924, 0.0
      %v2966 = vadd.f32 %v2964, %v2965
      %v2967 = vsel %vm988, %v2925, 0.0
      %v2968 = vadd.f32 %v2966, %v2967
      %v2969 = vsel %vm988, %v2926, 0.0
      %v2970 = vadd.f32 %v2968, %v2969
      %v2971 = vsel %vm988, %v2927, 0.0
      %v2972 = vadd.f32 %v2970, %v2971
      %v2973 = vsel %vm988, %v2928, 0.0
      %v2974 = vadd.f32 %v2972, %v2973
      %v2975 = vsel %vm988, %v2929, 0.0
      %v2976 = vadd.f32 %v2974, %v2975
      %v2977 = vsel %vm988, %v2930, 0.0
      %v2978 = vadd.f32 %v2976, %v2977
      %v2979 = vsel %vm988, %v2931, 0.0
      %v2980 = vadd.f32 %v2978, %v2979
      %v2981 = vsel %vm988, %v2932, 0.0
      %v2982 = vadd.f32 %v2980, %v2981
      %v2983 = vsel %vm988, %v2933, 0.0
      %v2984 = vadd.f32 %v2982, %v2983
      %v2985 = vsel %vm988, %v2934, 0.0
      %v2986 = vadd.f32 %v2984, %v2985
      %v2987 = vsel %vm988, %v2935, 0.0
      %v2988 = vadd.f32 %v2986, %v2987
      %v2989 = vsel %vm988, %v2936, 0.0
      %v2990 = vadd.f32 %v2988, %v2989
      %v2991 = vsel %vm988, %v2937, 0.0
      %v2992 = vadd.f32 %v2990, %v2991
      %v2993 = vsel %vm988, %v2938, 0.0
      %v2994 = vadd.f32 %v2992, %v2993
      %v2995 = vsel %vm988, %v2939, 0.0
      %v2996 = vadd.f32 %v2994, %v2995
      %v2997 = vsel %vm988, %v2940, 0.0
      %v2998 = vadd.f32 %v2996, %v2997
      %v2999 = vsel %vm988, %v2941, 0.0
      %v3000 = vadd.f32 %v2998, %v2999
      %v3001 = vsel %vm988, %v2942, 0.0
      %v3002 = vadd.f32 %v3000, %v3001
      %v3003 = vsel %vm988, %v2943, 0.0
      %v3004 = vadd.f32 %v3002, %v3003
      %v3005 = vsel %vm988, %v2944, 0.0
      %v3006 = vadd.f32 %v3004, %v3005
      %v3007 = vsel %vm988, %v2945, 0.0
      %v3008 = vadd.f32 %v3006, %v3007
      %v3009 = vrot.slane %v3008, 4
      %v3010 = vadd.f32 %v3008, %v3009
      %v3011 = vrot.slane %v3010, 2
      %v3012 = vadd.f32 %v3010, %v3011
      %v3013 = vrot.slane %v3012, 1
      %v3014 = vadd.f32 %v3012, %v3013
      %v3015 = vmul.f32 %v3014, 0.00390625
      %v3016 = vsub.f32 %v2914, %v3015
      %v3017 = vsub.f32 %v2915, %v3015
      %v3018 = vsub.f32 %v2916, %v3015
      %v3019 = vsub.f32 %v2917, %v3015
      %v3020 = vsub.f32 %v2918, %v3015
      %v3021 = vsub.f32 %v2919, %v3015
      %v3022 = vsub.f32 %v2920, %v3015
      %v3023 = vsub.f32 %v2921, %v3015
      %v3024 = vsub.f32 %v2922, %v3015
      %v3025 = vsub.f32 %v2923, %v3015
      %v3026 = vsub.f32 %v2924, %v3015
      %v3027 = vsub.f32 %v2925, %v3015
      %v3028 = vsub.f32 %v2926, %v3015
      %v3029 = vsub.f32 %v2927, %v3015
      %v3030 = vsub.f32 %v2928, %v3015
      %v3031 = vsub.f32 %v2929, %v3015
      %v3032 = vsub.f32 %v2930, %v3015
      %v3033 = vsub.f32 %v2931, %v3015
      %v3034 = vsub.f32 %v2932, %v3015
      %v3035 = vsub.f32 %v2933, %v3015
      %v3036 = vsub.f32 %v2934, %v3015
      %v3037 = vsub.f32 %v2935, %v3015
      %v3038 = vsub.f32 %v2936, %v3015
      %v3039 = vsub.f32 %v2937, %v3015
      %v3040 = vsub.f32 %v2938, %v3015
      %v3041 = vsub.f32 %v2939, %v3015
      %v3042 = vsub.f32 %v2940, %v3015
      %v3043 = vsub.f32 %v2941, %v3015
      %v3044 = vsub.f32 %v2942, %v3015
      %v3045 = vsub.f32 %v2943, %v3015
      %v3046 = vsub.f32 %v2944, %v3015
      %v3047 = vsub.f32 %v2945, %v3015
      %v3048 = vmul.f32 %v3016, %v3016
      %v3049 = vmul.f32 %v3017, %v3017
      %v3050 = vmul.f32 %v3018, %v3018
      %v3051 = vmul.f32 %v3019, %v3019
      %v3052 = vmul.f32 %v3020, %v3020
      %v3053 = vmul.f32 %v3021, %v3021
      %v3054 = vmul.f32 %v3022, %v3022
      %v3055 = vmul.f32 %v3023, %v3023
      %v3056 = vmul.f32 %v3024, %v3024
      %v3057 = vmul.f32 %v3025, %v3025
      %v3058 = vmul.f32 %v3026, %v3026
      %v3059 = vmul.f32 %v3027, %v3027
      %v3060 = vmul.f32 %v3028, %v3028
      %v3061 = vmul.f32 %v3029, %v3029
      %v3062 = vmul.f32 %v3030, %v3030
      %v3063 = vmul.f32 %v3031, %v3031
      %v3064 = vmul.f32 %v3032, %v3032
      %v3065 = vmul.f32 %v3033, %v3033
      %v3066 = vmul.f32 %v3034, %v3034
      %v3067 = vmul.f32 %v3035, %v3035
      %v3068 = vmul.f32 %v3036, %v3036
      %v3069 = vmul.f32 %v3037, %v3037
      %v3070 = vmul.f32 %v3038, %v3038
      %v3071 = vmul.f32 %v3039, %v3039
      %v3072 = vmul.f32 %v3040, %v3040
      %v3073 = vmul.f32 %v3041, %v3041
      %v3074 = vmul.f32 %v3042, %v3042
      %v3075 = vmul.f32 %v3043, %v3043
      %v3076 = vmul.f32 %v3044, %v3044
      %v3077 = vmul.f32 %v3045, %v3045
      %v3078 = vmul.f32 %v3046, %v3046
      %v3079 = vmul.f32 %v3047, %v3047
      %v3080 = vsel %vm988, %v3048, 0.0
      %v3081 = vsel %vm988, %v3049, 0.0
      %v3082 = vadd.f32 %v3080, %v3081
      %v3083 = vsel %vm988, %v3050, 0.0
      %v3084 = vadd.f32 %v3082, %v3083
      %v3085 = vsel %vm988, %v3051, 0.0
      %v3086 = vadd.f32 %v3084, %v3085
      %v3087 = vsel %vm988, %v3052, 0.0
      %v3088 = vadd.f32 %v3086, %v3087
      %v3089 = vsel %vm988, %v3053, 0.0
      %v3090 = vadd.f32 %v3088, %v3089
      %v3091 = vsel %vm988, %v3054, 0.0
      %v3092 = vadd.f32 %v3090, %v3091
      %v3093 = vsel %vm988, %v3055, 0.0
      %v3094 = vadd.f32 %v3092, %v3093
      %v3095 = vsel %vm988, %v3056, 0.0
      %v3096 = vadd.f32 %v3094, %v3095
      %v3097 = vsel %vm988, %v3057, 0.0
      %v3098 = vadd.f32 %v3096, %v3097
      %v3099 = vsel %vm988, %v3058, 0.0
      %v3100 = vadd.f32 %v3098, %v3099
      %v3101 = vsel %vm988, %v3059, 0.0
      %v3102 = vadd.f32 %v3100, %v3101
      %v3103 = vsel %vm988, %v3060, 0.0
      %v3104 = vadd.f32 %v3102, %v3103
      %v3105 = vsel %vm988, %v3061, 0.0
      %v3106 = vadd.f32 %v3104, %v3105
      %v3107 = vsel %vm988, %v3062, 0.0
      %v3108 = vadd.f32 %v3106, %v3107
      %v3109 = vsel %vm988, %v3063, 0.0
      %v3110 = vadd.f32 %v3108, %v3109
      %v3111 = vsel %vm988, %v3064, 0.0
      %v3112 = vadd.f32 %v3110, %v3111
      %v3113 = vsel %vm988, %v3065, 0.0
      %v3114 = vadd.f32 %v3112, %v3113
      %v3115 = vsel %vm988, %v3066, 0.0
      %v3116 = vadd.f32 %v3114, %v3115
      %v3117 = vsel %vm988, %v3067, 0.0
      %v3118 = vadd.f32 %v3116, %v3117
      %v3119 = vsel %vm988, %v3068, 0.0
      %v3120 = vadd.f32 %v3118, %v3119
      %v3121 = vsel %vm988, %v3069, 0.0
      %v3122 = vadd.f32 %v3120, %v3121
      %v3123 = vsel %vm988, %v3070, 0.0
      %v3124 = vadd.f32 %v3122, %v3123
      %v3125 = vsel %vm988, %v3071, 0.0
      %v3126 = vadd.f32 %v3124, %v3125
      %v3127 = vsel %vm988, %v3072, 0.0
      %v3128 = vadd.f32 %v3126, %v3127
      %v3129 = vsel %vm988, %v3073, 0.0
      %v3130 = vadd.f32 %v3128, %v3129
      %v3131 = vsel %vm988, %v3074, 0.0
      %v3132 = vadd.f32 %v3130, %v3131
      %v3133 = vsel %vm988, %v3075, 0.0
      %v3134 = vadd.f32 %v3132, %v3133
      %v3135 = vsel %vm988, %v3076, 0.0
      %v3136 = vadd.f32 %v3134, %v3135
      %v3137 = vsel %vm988, %v3077, 0.0
      %v3138 = vadd.f32 %v3136, %v3137
      %v3139 = vsel %vm988, %v3078, 0.0
      %v3140 = vadd.f32 %v3138, %v3139
      %v3141 = vsel %vm988, %v3079, 0.0
      %v3142 = vadd.f32 %v3140, %v3141
      %v3143 = vrot.slane %v3142, 4
      %v3144 = vadd.f32 %v3142, %v3143
      %v3145 = vrot.slane %v3144, 2
      %v3146 = vadd.f32 %v3144, %v3145
      %v3147 = vrot.slane %v3146, 1
      %v3148 = vadd.f32 %v3146, %v3147
      %v3149 = vmul.f32 %v3148, 0.00390625
      %v3150 = vadd.f32 %v3149, 1e-05
      %v3151 = vrsqrt.pop %v3150
      %v3152 = vmul.f32 %v3151, %v3150
      %v3153 = vmul.f32 %v3152, %v3151
      %v3154 = vmul.f32 0.5, %v3153
      %v3155 = vsub.f32 1.5, %v3154
      %v3156 = vmul.f32 %v3151, %v3155
      %vm3157 = vweird.f32 %v3150
      %vm3158 = vweird.f32 %v3151
      %vm3159 = vmor %vm3157, %vm3158
      %v3160 = vsel %vm3159, %v3151, %v3156
      %v3161 = vmul.f32 %v3016, %v3160
      %v3162 = vmul.f32 %v3017, %v3160
      %v3163 = vmul.f32 %v3018, %v3160
      %v3164 = vmul.f32 %v3019, %v3160
      %v3165 = vmul.f32 %v3020, %v3160
      %v3166 = vmul.f32 %v3021, %v3160
      %v3167 = vmul.f32 %v3022, %v3160
      %v3168 = vmul.f32 %v3023, %v3160
      %v3169 = vmul.f32 %v3024, %v3160
      %v3170 = vmul.f32 %v3025, %v3160
      %v3171 = vmul.f32 %v3026, %v3160
      %v3172 = vmul.f32 %v3027, %v3160
      %v3173 = vmul.f32 %v3028, %v3160
      %v3174 = vmul.f32 %v3029, %v3160
      %v3175 = vmul.f32 %v3030, %v3160
      %v3176 = vmul.f32 %v3031, %v3160
      %v3177 = vmul.f32 %v3032, %v3160
      %v3178 = vmul.f32 %v3033, %v3160
      %v3179 = vmul.f32 %v3034, %v3160
      %v3180 = vmul.f32 %v3035, %v3160
      %v3181 = vmul.f32 %v3036, %v3160
      %v3182 = vmul.f32 %v3037, %v3160
      %v3183 = vmul.f32 %v3038, %v3160
      %v3184 = vmul.f32 %v3039, %v3160
      %v3185 = vmul.f32 %v3040, %v3160
      %v3186 = vmul.f32 %v3041, %v3160
      %v3187 = vmul.f32 %v3042, %v3160
      %v3188 = vmul.f32 %v3043, %v3160
      %v3189 = vmul.f32 %v3044, %v3160
      %v3190 = vmul.f32 %v3045, %v3160
      %v3191 = vmul.f32 %v3046, %v3160
      %v3192 = vmul.f32 %v3047, %v3160
      %v3193 = vadd.f32 %v172, %v3161
      %v3194 = vadd.f32 %v173, %v3162
      %v3195 = vadd.f32 %v174, %v3163
      %v3196 = vadd.f32 %v175, %v3164
      %v3197 = vadd.f32 %v176, %v3165
      %v3198 = vadd.f32 %v177, %v3166
      %v3199 = vadd.f32 %v178, %v3167
      %v3200 = vadd.f32 %v179, %v3168
      %v3201 = vadd.f32 %v180, %v3169
      %v3202 = vadd.f32 %v181, %v3170
      %v3203 = vadd.f32 %v182, %v3171
      %v3204 = vadd.f32 %v183, %v3172
      %v3205 = vadd.f32 %v184, %v3173
      %v3206 = vadd.f32 %v185, %v3174
      %v3207 = vadd.f32 %v186, %v3175
      %v3208 = vadd.f32 %v187, %v3176
      %v3209 = vadd.f32 %v188, %v3177
      %v3210 = vadd.f32 %v189, %v3178
      %v3211 = vadd.f32 %v190, %v3179
      %v3212 = vadd.f32 %v191, %v3180
      %v3213 = vadd.f32 %v192, %v3181
      %v3214 = vadd.f32 %v193, %v3182
      %v3215 = vadd.f32 %v194, %v3183
      %v3216 = vadd.f32 %v195, %v3184
      %v3217 = vadd.f32 %v196, %v3185
      %v3218 = vadd.f32 %v197, %v3186
      %v3219 = vadd.f32 %v198, %v3187
      %v3220 = vadd.f32 %v199, %v3188
      %v3221 = vadd.f32 %v200, %v3189
      %v3222 = vadd.f32 %v201, %v3190
      %v3223 = vadd.f32 %v202, %v3191
      %v3224 = vadd.f32 %v203, %v3192
      %3225 = vst.msk [vmem:[%s170] sm:$0xff] %vm988, %v3193
      %3226 = vst.msk [vmem:[%s170 + $0x8] sm:$0xff] %vm988, %v3194
      %3227 = vst.msk [vmem:[%s170 + $0x10] sm:$0xff] %vm988, %v3195
      %3228 = vst.msk [vmem:[%s170 + $0x18] sm:$0xff] %vm988, %v3196
      %3229 = vst.msk [vmem:[%s170 + $0x20] sm:$0xff] %vm988, %v3197
      %3230 = vst.msk [vmem:[%s170 + $0x28] sm:$0xff] %vm988, %v3198
      %3231 = vst.msk [vmem:[%s170 + $0x30] sm:$0xff] %vm988, %v3199
      %3232 = vst.msk [vmem:[%s170 + $0x38] sm:$0xff] %vm988, %v3200
      %3233 = vst.msk [vmem:[%s170 + $0x40] sm:$0xff] %vm988, %v3201
      %3234 = vst.msk [vmem:[%s170 + $0x48] sm:$0xff] %vm988, %v3202
      %3235 = vst.msk [vmem:[%s170 + $0x50] sm:$0xff] %vm988, %v3203
      %3236 = vst.msk [vmem:[%s170 + $0x58] sm:$0xff] %vm988, %v3204
      %3237 = vst.msk [vmem:[%s170 + $0x60] sm:$0xff] %vm988, %v3205
      %3238 = vst.msk [vmem:[%s170 + $0x68] sm:$0xff] %vm988, %v3206
      %3239 = vst.msk [vmem:[%s170 + $0x70] sm:$0xff] %vm988, %v3207
      %3240 = vst.msk [vmem:[%s170 + $0x78] sm:$0xff] %vm988, %v3208
      %3241 = vst.msk [vmem:[%s170 + $0x80] sm:$0xff] %vm988, %v3209
      %3242 = vst.msk [vmem:[%s170 + $0x88] sm:$0xff] %vm988, %v3210
      %3243 = vst.msk [vmem:[%s170 + $0x90] sm:$0xff] %vm988, %v3211
      %3244 = vst.msk [vmem:[%s170 + $0x98] sm:$0xff] %vm988, %v3212
      %3245 = vst.msk [vmem:[%s170 + $0xa0] sm:$0xff] %vm988, %v3213
      %3246 = vst.msk [vmem:[%s170 + $0xa8] sm:$0xff] %vm988, %v3214
      %3247 = vst.msk [vmem:[%s170 + $0xb0] sm:$0xff] %vm988, %v3215
      %3248 = vst.msk [vmem:[%s170 + $0xb8] sm:$0xff] %vm988, %v3216
      %3249 = vst.msk [vmem:[%s170 + $0xc0] sm:$0xff] %vm988, %v3217
      %3250 = vst.msk [vmem:[%s170 + $0xc8] sm:$0xff] %vm988, %v3218
      %3251 = vst.msk [vmem:[%s170 + $0xd0] sm:$0xff] %vm988, %v3219
      %3252 = vst.msk [vmem:[%s170 + $0xd8] sm:$0xff] %vm988, %v3220
      %3253 = vst.msk [vmem:[%s170 + $0xe0] sm:$0xff] %vm988, %v3221
      %3254 = vst.msk [vmem:[%s170 + $0xe8] sm:$0xff] %vm988, %v3222
      %3255 = vst.msk [vmem:[%s170 + $0xf0] sm:$0xff] %vm988, %v3223
      %3256 = vst.msk [vmem:[%s170 + $0xf8] sm:$0xff] %vm988, %v3224
      %p3257 = scmp.lt.s32.totalorder %s14, 1
      %s3258 = scalar_select %p3257, %s14, 1
      %s3259 = smul.addr %s3258, 32
      %s3260 = smul.addr %s3259, 8
      %s3261 = scalar_lea.vmem %s3, %s3260
      // Predicated region
      $region33: #{residual_block_pallas.1} parent=31 // pred_check
        %p3262 = pneg %p100
      $region34: #{residual_block_pallas.1} parent=31 // pred_check_branch
        %3264 = sbr.rel (%p3262) target = $region36
      $region35: #{residual_block_pallas.1} parent=31 // pred_region
        _
      $region36: #{residual_block_pallas.1} parent=31 // pred_fallthru
        _
    $region32: #{residual_block_pallas.1} parent=5 // pred_fallthru
      _
    %p3265 = scmp.le.s32.totalorder 2, %s9
    // Predicated region
    $region37: #{residual_block_pallas.1} parent=5 // pred_check
      %p3266 = pneg %p3265
    $region38: #{residual_block_pallas.1} parent=5 // pred_check_branch
      %3268 = sbr.rel (%p3266) target = $region40
    $region39: #{residual_block_pallas.1} parent=5 // pred_region
      %s3269 = ssub.s32 %s9, 2
      // Predicated region
      $region41: #{residual_block_pallas.1} parent=39 // pred_check
        %p3270 = pneg %p106
      $region42: #{residual_block_pallas.1} parent=39 // pred_check_branch
        %3272 = sbr.rel (%p3270) target = $region44
      $region43: #{residual_block_pallas.1} parent=39 // pred_region
        %p3273 = scmp.lt.s32.totalorder %s15, 1
        %s3274 = scalar_select %p3273, %s15, 1
        %s3275 = smul.addr %s3274, 32
        %s3276 = smul.addr %s3275, 8
        %s3277 = scalar_lea.vmem %s3, %s3276
      $region44: #{residual_block_pallas.1} parent=39 // pred_fallthru
        _
    $region40: #{residual_block_pallas.1} parent=5 // pred_fallthru
      _
  $region6: #{residual_block_pallas.1} parent=0 // loop_footer
    %s13 = sadd.s32 1, %s9
  $region7: #{residual_block_pallas.1} parent=0 // loop_footer_branch
    %8 = sbr.rel target = $region3
  $region8: #{residual_block_pallas.1} parent=0 // loop_exit
    _

</llo_original>
